<compile_context>
chip_gen: v5e
topology: v5e:2x2
jax: 0.10.0
libtpu: 0.0.40
codegen_flags: <defaults>
</compile_context>

<pallas_src>
import jax
import jax.numpy as jnp
import numpy as np
from jax.experimental import pallas as pl
from jax.experimental.pallas import tpu as pltpu


_PARAMS = pltpu.CompilerParams(dimension_semantics=("arbitrary",))


def _full_spec(shape):
    zeros = (0,) * len(shape)
    return pl.BlockSpec(shape, lambda i, _z=zeros: _z)


# --------------------------- in-kernel building blocks ----------------------
def _conv3x3_block(x, shu, shd, m_ref, b_row):
    """conv3x3(pad=1) + bias + ReLU on a lane-dense (N*H, W*Cin) activation.

    shu / shd : (N*H, N*H) row-shift selectors (row y-1 / y+1, halo rows -> 0).
    m_ref     : (3, W*Cin, W*Cout) banded tap matrices (one per kernel row);
                the x-direction taps and x-padding are folded into the bands.
    b_row     : (1, W*Cout) bias tiled over x.
    """
    x_up = jnp.dot(shu, x, preferred_element_type=jnp.float32)   # input row y-1
    x_dn = jnp.dot(shd, x, preferred_element_type=jnp.float32)   # input row y+1
    acc = jnp.dot(x_up, m_ref[0], preferred_element_type=jnp.float32)
    acc = acc + jnp.dot(x, m_ref[1], preferred_element_type=jnp.float32)
    acc = acc + jnp.dot(x_dn, m_ref[2], preferred_element_type=jnp.float32)
    return jnp.maximum(acc + b_row, 0.0)


def _maxpool2x2_block(x, shd, s_even, lane_shift, s_lane):
    """2x2/stride-2 maxpool on a lane-dense (N*H, W*C) activation."""
    row_max = jnp.maximum(x, jnp.dot(shd, x, preferred_element_type=jnp.float32))
    x = jnp.dot(s_even, row_max, preferred_element_type=jnp.float32)   # keep even rows
    lane_max = jnp.maximum(x, jnp.dot(x, lane_shift, preferred_element_type=jnp.float32))
    return jnp.dot(lane_max, s_lane, preferred_element_type=jnp.float32)  # keep even x


def _make_fused_kernel(n_stages):
    def kernel(*refs):
        x_ref, o_ref = refs[0], refs[-1]
        x = x_ref[...]
        i = 1
        for _ in range(n_stages):
            shu, shd, m_a, b_a, m_b, b_b, s_even, lane_shift, s_lane = refs[i:i + 9]
            i += 9
            x = _conv3x3_block(x, shu[...], shd[...], m_a, b_a[...])
            x = _conv3x3_block(x, shu[...], shd[...], m_b, b_b[...])
            x = _maxpool2x2_block(x, shd[...], s_even[...], lane_shift[...], s_lane[...])
        hwb, dmask, rsum, csum, bh = refs[i:i + 5]
        # Linear head: the PyTorch NCHW-flatten order is baked into hwb; the
        # (row = n*Hf + y) structure of the last feature map is reduced with a
        # diagonal mask plus row/column summation matrices (all precomputed).
        zk = jnp.dot(x, hwb[...], preferred_element_type=jnp.float32) * dmask[...]
        logits = jnp.dot(jnp.dot(rsum[...], zk, preferred_element_type=jnp.float32),
                         csum[...], preferred_element_type=jnp.float32) + bh[...]
        # softmax(dim=1)
        m = jnp.max(logits, axis=1, keepdims=True)
        e = jnp.exp(logits - m)
        o_ref[...] = (e / jnp.sum(e, axis=1, keepdims=True)).astype(o_ref.dtype)
    return kernel


# ------------------- init-time constant matrices (host side) ----------------
def _band_matrices(w_pt, W):
    """PyTorch (Cout,Cin,3,3) conv weight -> (3, W*Cin, W*Cout) banded matrices."""
    w = np.asarray(w_pt, dtype=np.float32)
    co, ci = w.shape[0], w.shape[1]
    M = np.zeros((3, W * ci, W * co), np.float32)
    for kh in range(3):
        for x in range(W):
            for kw in range(3):
                xx = x + kw - 1
                if 0 <= xx < W:
                    M[kh, xx * ci:(xx + 1) * ci, x * co:(x + 1) * co] = w[:, :, kh, kw].T
    return M


def _row_shift_matrices(N, H):
    """Row selectors: up[r] <- row r-1 (0 at image top), dn[r] <- row r+1 (0 at bottom)."""
    R = N * H
    up = np.zeros((R, R), np.float32)
    dn = np.zeros((R, R), np.float32)
    for r in range(R):
        if r % H != 0:
            up[r, r - 1] = 1.0
        if r % H != H - 1:
            dn[r, r + 1] = 1.0
    return up, dn


def _pool_matrices(N, H, W, C):
    H2, W2 = H // 2, W // 2
    s_even = np.zeros((N * H2, N * H), np.float32)
    for n in range(N):
        for y2 in range(H2):
            s_even[n * H2 + y2, n * H + 2 * y2] = 1.0
    lane_shift = np.zeros((W * C, W * C), np.float32)   # col j <- col j+C
    for j in range(W * C - C):
        lane_shift[j + C, j] = 1.0
    s_lane = np.zeros((W * C, W2 * C), np.float32)      # keep even x blocks
    for x2 in range(W2):
        for c in range(C):
            s_lane[(2 * x2) * C + c, x2 * C + c] = 1.0
    return s_even, lane_shift, s_lane


def _head_matrices(head_w, head_b, N, Hf, Wf, Cf, K):
    hw = np.asarray(head_w, dtype=np.float32)           # (K, Cf*Hf*Wf), NCHW flatten
    hwb = np.zeros((Wf * Cf, Hf * K), np.float32)
    for y in range(Hf):
        for x in range(Wf):
            for c in range(Cf):
                for k in range(K):
                    hwb[x * Cf + c, y * K + k] = hw[k, c * Hf * Wf + y * Wf + x]
    dmask = np.zeros((N * Hf, Hf * K), np.float32)
    for n in range(N):
        for y in range(Hf):
            for k in range(K):
                dmask[n * Hf + y, y * K + k] = 1.0
    rsum = np.zeros((N, N * Hf), np.float32)
    for n in range(N):
        rsum[n, n * Hf:(n + 1) * Hf] = 1.0
    csum = np.zeros((Hf * K, K), np.float32)
    for y in range(Hf):
        for k in range(K):
            csum[y * K + k, k] = 1.0
    bh = np.asarray(head_b, dtype=np.float32).reshape(1, K)
    return hwb, dmask, rsum, csum, bh


def build_classifier_consts(params, batch, hw, features, num_classes):
    """All weight-derived matrices for the fused kernel (batch-size specific)."""
    consts = []
    H = hw
    conv_idx = 0
    for cout in features:
        W = H
        shu, shd = _row_shift_matrices(batch, H)
        consts += [shu, shd]
        for _ in range(2):
            w_pt, b = params["convs"][conv_idx]
            conv_idx += 1
            consts += [_band_matrices(w_pt, W),
                       np.tile(np.asarray(b, dtype=np.float32), W).reshape(1, W * cout)]
        consts += list(_pool_matrices(batch, H, W, cout))
        H = H // 2
    Hf = Wf = H
    consts += list(_head_matrices(params["head_w"], params["head_b"],
                                  batch, Hf, Wf, features[-1], num_classes))
    return [jnp.asarray(c) for c in consts]


# ------------------------------- forward ------------------------------------
def classifier_forward(x_nchw, consts, num_classes):
    n, c, h, w = x_nchw.shape
    # only out-of-kernel op: lay the 8 KiB input out lane-dense as (N*H, W*C)
    x_flat = jnp.transpose(x_nchw, (0, 2, 3, 1)).reshape(n * h, w * c)
    inputs = [x_flat] + list(consts)
    n_stages = (len(consts) - 5) // 9
    return pl.pallas_call(
        _make_fused_kernel(n_stages),
        grid=(1,),
        in_specs=[_full_spec(a.shape) for a in inputs],
        out_specs=_full_spec((n, num_classes)),
        out_shape=jax.ShapeDtypeStruct((n, num_classes), jnp.float32),
        compiler_params=_PARAMS,
    )(*inputs)


# ---------------------------- synthetic weights -----------------------------
def init_params(key, in_ch=4, features=(8, 16), num_classes=2, hw=16):
    n_conv = 2 * len(features)
    keys = jax.random.split(key, 2 * n_conv + 2)
    ki = 0
    convs = []
    c = in_ch
    for cout in features:
        for cin in (c, cout):                      # double conv per stage
            std = (2.0 / (cin * 9)) ** 0.5
            w = std * jax.random.normal(keys[ki], (cout, cin, 3, 3), jnp.float32)
            ki += 1
            b = 0.05 * jax.random.normal(keys[ki], (cout,), jnp.float32)
            ki += 1
            convs.append((w, b))
        c = cout
    fdim = features[-1] * (hw // (2 ** len(features))) ** 2   # LazyLinear in_features
    head_w = (1.0 / fdim) ** 0.5 * jax.random.normal(keys[ki], (num_classes, fdim), jnp.float32)
    ki += 1
    head_b = 0.05 * jax.random.normal(keys[ki], (num_classes,), jnp.float32)
    return {"convs": convs, "head_w": head_w, "head_b": head_b}


# ----------------------- pure-JAX reference (for check) ---------------------
def reference_forward(x_nchw, params, features=(8, 16)):
    x = jnp.transpose(x_nchw, (0, 2, 3, 1)).astype(jnp.float32)
    idx = 0
    for _ in features:
        for _ in range(2):
            w, b = params["convs"][idx]
            idx += 1
            wk = jnp.transpose(w, (2, 3, 1, 0))    # HWIO
            x = jax.lax.conv_general_dilated(
                x, wk, window_strides=(1, 1), padding="SAME",
                dimension_numbers=("NHWC", "HWIO", "NHWC"),
                precision=jax.lax.Precision.HIGHEST)
            x = jnp.maximum(x + b, 0.0)
        x = jax.lax.reduce_window(x, -jnp.inf, jax.lax.max,
                                  (1, 2, 2, 1), (1, 2, 2, 1), "VALID")
    feat = jnp.transpose(x, (0, 3, 1, 2)).reshape(x.shape[0], -1)   # NCHW flatten
    logits = jnp.dot(feat, params["head_w"].T,
                     precision=jax.lax.Precision.HIGHEST) + params["head_b"]
    return jax.nn.softmax(logits, axis=1)


if __name__ == "__main__":
    key = jax.random.PRNGKey(0)
    pkey, xkey = jax.random.split(key)
    batch, in_ch, hw = 2, 4, 16
    features, num_classes = (8, 16), 2

    params = init_params(pkey, in_ch=in_ch, features=features,
                         num_classes=num_classes, hw=hw)
    consts = build_classifier_consts(params, batch=batch, hw=hw,
                                     features=features, num_classes=num_classes)
    x = jax.random.normal(xkey, (batch, in_ch, hw, hw), jnp.float32)   # NCHW, like PyTorch

    fwd = jax.jit(lambda xx: classifier_forward(xx, consts, num_classes))
    out = jax.block_until_ready(fwd(x))
    ref = reference_forward(x, params, features)

    assert out.shape == (batch, num_classes)
    assert bool(jnp.allclose(jnp.sum(out, axis=1), 1.0, atol=1e-5))
    assert float(jnp.max(jnp.abs(out - ref))) < 1e-2
    print("KERNEL_OK")
</pallas_src>

<mosaic_0001>
module attributes {stable_mosaic.version = 11 : i64} {
  func.func @kernel(%arg0: i32, %arg1: memref<32x64xf32, #tpu.memory_space<vmem>>, %arg2: memref<32x32xf32, #tpu.memory_space<vmem>>, %arg3: memref<32x32xf32, #tpu.memory_space<vmem>>, %arg4: memref<3x64x128xf32, #tpu.memory_space<vmem>>, %arg5: memref<1x128xf32, #tpu.memory_space<vmem>>, %arg6: memref<3x128x128xf32, #tpu.memory_space<vmem>>, %arg7: memref<1x128xf32, #tpu.memory_space<vmem>>, %arg8: memref<16x32xf32, #tpu.memory_space<vmem>>, %arg9: memref<128x128xf32, #tpu.memory_space<vmem>>, %arg10: memref<128x64xf32, #tpu.memory_space<vmem>>, %arg11: memref<16x16xf32, #tpu.memory_space<vmem>>, %arg12: memref<16x16xf32, #tpu.memory_space<vmem>>, %arg13: memref<3x64x128xf32, #tpu.memory_space<vmem>>, %arg14: memref<1x128xf32, #tpu.memory_space<vmem>>, %arg15: memref<3x128x128xf32, #tpu.memory_space<vmem>>, %arg16: memref<1x128xf32, #tpu.memory_space<vmem>>, %arg17: memref<8x16xf32, #tpu.memory_space<vmem>>, %arg18: memref<128x128xf32, #tpu.memory_space<vmem>>, %arg19: memref<128x64xf32, #tpu.memory_space<vmem>>, %arg20: memref<64x8xf32, #tpu.memory_space<vmem>>, %arg21: memref<8x8xf32, #tpu.memory_space<vmem>>, %arg22: memref<2x8xf32, #tpu.memory_space<vmem>>, %arg23: memref<8x2xf32, #tpu.memory_space<vmem>>, %arg24: memref<1x2xf32, #tpu.memory_space<vmem>>, %arg25: memref<2x2xf32, #tpu.memory_space<vmem>>) attributes {dimension_semantics = [#tpu.dimension_semantics<arbitrary>], iteration_bounds = array<i64: 1>, scalar_prefetch = 0 : i64, scratch_operands = 0 : i64, tpu.core_type = #tpu.core_type<tc>, window_params = [{pipeline_mode = #tpu.pipeline_mode<synchronous>, transform_indices = @transform_0, window_bounds = array<i64: 32, 64>}, {pipeline_mode = #tpu.pipeline_mode<synchronous>, transform_indices = @transform_1, window_bounds = array<i64: 32, 32>}, {pipeline_mode = #tpu.pipeline_mode<synchronous>, transform_indices = @transform_2, window_bounds = array<i64: 32, 32>}, {pipeline_mode = #tpu.pipeline_mode<synchronous>, transform_indices = @transform_3, window_bounds = array<i64: 3, 64, 128>}, {pipeline_mode = #tpu.pipeline_mode<synchronous>, transform_indices = @transform_4, window_bounds = array<i64: 1, 128>}, {pipeline_mode = #tpu.pipeline_mode<synchronous>, transform_indices = @transform_5, window_bounds = array<i64: 3, 128, 128>}, {pipeline_mode = #tpu.pipeline_mode<synchronous>, transform_indices = @transform_6, window_bounds = array<i64: 1, 128>}, {pipeline_mode = #tpu.pipeline_mode<synchronous>, transform_indices = @transform_7, window_bounds = array<i64: 16, 32>}, {pipeline_mode = #tpu.pipeline_mode<synchronous>, transform_indices = @transform_8, window_bounds = array<i64: 128, 128>}, {pipeline_mode = #tpu.pipeline_mode<synchronous>, transform_indices = @transform_9, window_bounds = array<i64: 128, 64>}, {pipeline_mode = #tpu.pipeline_mode<synchronous>, transform_indices = @transform_10, window_bounds = array<i64: 16, 16>}, {pipeline_mode = #tpu.pipeline_mode<synchronous>, transform_indices = @transform_11, window_bounds = array<i64: 16, 16>}, {pipeline_mode = #tpu.pipeline_mode<synchronous>, transform_indices = @transform_12, window_bounds = array<i64: 3, 64, 128>}, {pipeline_mode = #tpu.pipeline_mode<synchronous>, transform_indices = @transform_13, window_bounds = array<i64: 1, 128>}, {pipeline_mode = #tpu.pipeline_mode<synchronous>, transform_indices = @transform_14, window_bounds = array<i64: 3, 128, 128>}, {pipeline_mode = #tpu.pipeline_mode<synchronous>, transform_indices = @transform_15, window_bounds = array<i64: 1, 128>}, {pipeline_mode = #tpu.pipeline_mode<synchronous>, transform_indices = @transform_16, window_bounds = array<i64: 8, 16>}, {pipeline_mode = #tpu.pipeline_mode<synchronous>, transform_indices = @transform_17, window_bounds = array<i64: 128, 128>}, {pipeline_mode = #tpu.pipeline_mode<synchronous>, transform_indices = @transform_18, window_bounds = array<i64: 128, 64>}, {pipeline_mode = #tpu.pipeline_mode<synchronous>, transform_indices = @transform_19, window_bounds = array<i64: 64, 8>}, {pipeline_mode = #tpu.pipeline_mode<synchronous>, transform_indices = @transform_20, window_bounds = array<i64: 8, 8>}, {pipeline_mode = #tpu.pipeline_mode<synchronous>, transform_indices = @transform_21, window_bounds = array<i64: 2, 8>}, {pipeline_mode = #tpu.pipeline_mode<synchronous>, transform_indices = @transform_22, window_bounds = array<i64: 8, 2>}, {pipeline_mode = #tpu.pipeline_mode<synchronous>, transform_indices = @transform_23, window_bounds = array<i64: 1, 2>}, {pipeline_mode = #tpu.pipeline_mode<synchronous>, transform_indices = @transform_24, window_bounds = array<i64: 2, 2>}]} {
    %c0 = arith.constant 0 : index
    %c0_0 = arith.constant 0 : index
    %0 = vector.load %arg1[%c0, %c0_0] : memref<32x64xf32, #tpu.memory_space<vmem>>, vector<32x64xf32>
    %c0_1 = arith.constant 0 : index
    %c0_2 = arith.constant 0 : index
    %1 = vector.load %arg2[%c0_1, %c0_2] : memref<32x32xf32, #tpu.memory_space<vmem>>, vector<32x32xf32>
    %c0_3 = arith.constant 0 : index
    %c0_4 = arith.constant 0 : index
    %2 = vector.load %arg3[%c0_3, %c0_4] : memref<32x32xf32, #tpu.memory_space<vmem>>, vector<32x32xf32>
    %c0_5 = arith.constant 0 : index
    %c0_6 = arith.constant 0 : index
    %3 = vector.load %arg5[%c0_5, %c0_6] : memref<1x128xf32, #tpu.memory_space<vmem>>, vector<1x128xf32>
    %cst = arith.constant dense<0.000000e+00> : vector<32x64xf32>
    %4 = tpu.matmul %1, %0, %cst {dimension_numbers = #tpu.dot_dimension_numbers<[1], [0], [0], [1], [0, 0, 1, 1], [], []>} : vector<32x32xf32>, vector<32x64xf32>, vector<32x64xf32> -> vector<32x64xf32>
    %cst_7 = arith.constant dense<0.000000e+00> : vector<32x64xf32>
    %5 = tpu.matmul %2, %0, %cst_7 {dimension_numbers = #tpu.dot_dimension_numbers<[1], [0], [0], [1], [0, 0, 1, 1], [], []>} : vector<32x32xf32>, vector<32x64xf32>, vector<32x64xf32> -> vector<32x64xf32>
    %c0_8 = arith.constant 0 : index
    %c0_9 = arith.constant 0 : index
    %c0_10 = arith.constant 0 : index
    %6 = vector.load %arg4[%c0_8, %c0_9, %c0_10] : memref<3x64x128xf32, #tpu.memory_space<vmem>>, vector<1x64x128xf32>
    %7 = vector.shape_cast %6 : vector<1x64x128xf32> to vector<64x128xf32>
    %cst_11 = arith.constant dense<0.000000e+00> : vector<32x128xf32>
    %8 = tpu.matmul %4, %7, %cst_11 {dimension_numbers = #tpu.dot_dimension_numbers<[1], [0], [0], [1], [0, 0, 1, 1], [], []>} : vector<32x64xf32>, vector<64x128xf32>, vector<32x128xf32> -> vector<32x128xf32>
    %c1 = arith.constant 1 : index
    %c0_12 = arith.constant 0 : index
    %c0_13 = arith.constant 0 : index
    %9 = vector.load %arg4[%c1, %c0_12, %c0_13] : memref<3x64x128xf32, #tpu.memory_space<vmem>>, vector<1x64x128xf32>
    %10 = vector.shape_cast %9 : vector<1x64x128xf32> to vector<64x128xf32>
    %cst_14 = arith.constant dense<0.000000e+00> : vector<32x128xf32>
    %11 = tpu.matmul %0, %10, %cst_14 {dimension_numbers = #tpu.dot_dimension_numbers<[1], [0], [0], [1], [0, 0, 1, 1], [], []>} : vector<32x64xf32>, vector<64x128xf32>, vector<32x128xf32> -> vector<32x128xf32>
    %12 = arith.addf %8, %11 : vector<32x128xf32>
    %c2 = arith.constant 2 : index
    %c0_15 = arith.constant 0 : index
    %c0_16 = arith.constant 0 : index
    %13 = vector.load %arg4[%c2, %c0_15, %c0_16] : memref<3x64x128xf32, #tpu.memory_space<vmem>>, vector<1x64x128xf32>
    %14 = vector.shape_cast %13 : vector<1x64x128xf32> to vector<64x128xf32>
    %cst_17 = arith.constant dense<0.000000e+00> : vector<32x128xf32>
    %15 = tpu.matmul %5, %14, %cst_17 {dimension_numbers = #tpu.dot_dimension_numbers<[1], [0], [0], [1], [0, 0, 1, 1], [], []>} : vector<32x64xf32>, vector<64x128xf32>, vector<32x128xf32> -> vector<32x128xf32>
    %16 = arith.addf %12, %15 : vector<32x128xf32>
    %17 = vector.broadcast %3 : vector<1x128xf32> to vector<32x128xf32>
    %18 = arith.addf %16, %17 : vector<32x128xf32>
    %cst_18 = arith.constant 0.000000e+00 : f32
    %19 = vector.broadcast %cst_18 : f32 to vector<32x128xf32>
    %20 = arith.maximumf %18, %19 : vector<32x128xf32>
    %c0_19 = arith.constant 0 : index
    %c0_20 = arith.constant 0 : index
    %21 = vector.load %arg2[%c0_19, %c0_20] : memref<32x32xf32, #tpu.memory_space<vmem>>, vector<32x32xf32>
    %c0_21 = arith.constant 0 : index
    %c0_22 = arith.constant 0 : index
    %22 = vector.load %arg3[%c0_21, %c0_22] : memref<32x32xf32, #tpu.memory_space<vmem>>, vector<32x32xf32>
    %c0_23 = arith.constant 0 : index
    %c0_24 = arith.constant 0 : index
    %23 = vector.load %arg7[%c0_23, %c0_24] : memref<1x128xf32, #tpu.memory_space<vmem>>, vector<1x128xf32>
    %cst_25 = arith.constant dense<0.000000e+00> : vector<32x128xf32>
    %24 = tpu.matmul %21, %20, %cst_25 {dimension_numbers = #tpu.dot_dimension_numbers<[1], [0], [0], [1], [0, 0, 1, 1], [], []>} : vector<32x32xf32>, vector<32x128xf32>, vector<32x128xf32> -> vector<32x128xf32>
    %cst_26 = arith.constant dense<0.000000e+00> : vector<32x128xf32>
    %25 = tpu.matmul %22, %20, %cst_26 {dimension_numbers = #tpu.dot_dimension_numbers<[1], [0], [0], [1], [0, 0, 1, 1], [], []>} : vector<32x32xf32>, vector<32x128xf32>, vector<32x128xf32> -> vector<32x128xf32>
    %c0_27 = arith.constant 0 : index
    %c0_28 = arith.constant 0 : index
    %c0_29 = arith.constant 0 : index
    %26 = vector.load %arg6[%c0_27, %c0_28, %c0_29] : memref<3x128x128xf32, #tpu.memory_space<vmem>>, vector<1x128x128xf32>
    %27 = vector.shape_cast %26 : vector<1x128x128xf32> to vector<128x128xf32>
    %cst_30 = arith.constant dense<0.000000e+00> : vector<32x128xf32>
    %28 = tpu.matmul %24, %27, %cst_30 {dimension_numbers = #tpu.dot_dimension_numbers<[1], [0], [0], [1], [0, 0, 1, 1], [], []>} : vector<32x128xf32>, vector<128x128xf32>, vector<32x128xf32> -> vector<32x128xf32>
    %c1_31 = arith.constant 1 : index
    %c0_32 = arith.constant 0 : index
    %c0_33 = arith.constant 0 : index
    %29 = vector.load %arg6[%c1_31, %c0_32, %c0_33] : memref<3x128x128xf32, #tpu.memory_space<vmem>>, vector<1x128x128xf32>
    %30 = vector.shape_cast %29 : vector<1x128x128xf32> to vector<128x128xf32>
    %cst_34 = arith.constant dense<0.000000e+00> : vector<32x128xf32>
    %31 = tpu.matmul %20, %30, %cst_34 {dimension_numbers = #tpu.dot_dimension_numbers<[1], [0], [0], [1], [0, 0, 1, 1], [], []>} : vector<32x128xf32>, vector<128x128xf32>, vector<32x128xf32> -> vector<32x128xf32>
    %32 = arith.addf %28, %31 : vector<32x128xf32>
    %c2_35 = arith.constant 2 : index
    %c0_36 = arith.constant 0 : index
    %c0_37 = arith.constant 0 : index
    %33 = vector.load %arg6[%c2_35, %c0_36, %c0_37] : memref<3x128x128xf32, #tpu.memory_space<vmem>>, vector<1x128x128xf32>
    %34 = vector.shape_cast %33 : vector<1x128x128xf32> to vector<128x128xf32>
    %cst_38 = arith.constant dense<0.000000e+00> : vector<32x128xf32>
    %35 = tpu.matmul %25, %34, %cst_38 {dimension_numbers = #tpu.dot_dimension_numbers<[1], [0], [0], [1], [0, 0, 1, 1], [], []>} : vector<32x128xf32>, vector<128x128xf32>, vector<32x128xf32> -> vector<32x128xf32>
    %36 = arith.addf %32, %35 : vector<32x128xf32>
    %37 = vector.broadcast %23 : vector<1x128xf32> to vector<32x128xf32>
    %38 = arith.addf %36, %37 : vector<32x128xf32>
    %cst_39 = arith.constant 0.000000e+00 : f32
    %39 = vector.broadcast %cst_39 : f32 to vector<32x128xf32>
    %40 = arith.maximumf %38, %39 : vector<32x128xf32>
    %c0_40 = arith.constant 0 : index
    %c0_41 = arith.constant 0 : index
    %41 = vector.load %arg3[%c0_40, %c0_41] : memref<32x32xf32, #tpu.memory_space<vmem>>, vector<32x32xf32>
    %c0_42 = arith.constant 0 : index
    %c0_43 = arith.constant 0 : index
    %42 = vector.load %arg8[%c0_42, %c0_43] : memref<16x32xf32, #tpu.memory_space<vmem>>, vector<16x32xf32>
    %c0_44 = arith.constant 0 : index
    %c0_45 = arith.constant 0 : index
    %43 = vector.load %arg9[%c0_44, %c0_45] : memref<128x128xf32, #tpu.memory_space<vmem>>, vector<128x128xf32>
    %c0_46 = arith.constant 0 : index
    %c0_47 = arith.constant 0 : index
    %44 = vector.load %arg10[%c0_46, %c0_47] : memref<128x64xf32, #tpu.memory_space<vmem>>, vector<128x64xf32>
    %cst_48 = arith.constant dense<0.000000e+00> : vector<32x128xf32>
    %45 = tpu.matmul %41, %40, %cst_48 {dimension_numbers = #tpu.dot_dimension_numbers<[1], [0], [0], [1], [0, 0, 1, 1], [], []>} : vector<32x32xf32>, vector<32x128xf32>, vector<32x128xf32> -> vector<32x128xf32>
    %46 = arith.maximumf %40, %45 : vector<32x128xf32>
    %cst_49 = arith.constant dense<0.000000e+00> : vector<16x128xf32>
    %47 = tpu.matmul %42, %46, %cst_49 {dimension_numbers = #tpu.dot_dimension_numbers<[1], [0], [0], [1], [0, 0, 1, 1], [], []>} : vector<16x32xf32>, vector<32x128xf32>, vector<16x128xf32> -> vector<16x128xf32>
    %cst_50 = arith.constant dense<0.000000e+00> : vector<16x128xf32>
    %48 = tpu.matmul %47, %43, %cst_50 {dimension_numbers = #tpu.dot_dimension_numbers<[1], [0], [0], [1], [0, 0, 1, 1], [], []>} : vector<16x128xf32>, vector<128x128xf32>, vector<16x128xf32> -> vector<16x128xf32>
    %49 = arith.maximumf %47, %48 : vector<16x128xf32>
    %cst_51 = arith.constant dense<0.000000e+00> : vector<16x64xf32>
    %50 = tpu.matmul %49, %44, %cst_51 {dimension_numbers = #tpu.dot_dimension_numbers<[1], [0], [0], [1], [0, 0, 1, 1], [], []>} : vector<16x128xf32>, vector<128x64xf32>, vector<16x64xf32> -> vector<16x64xf32>
    %c0_52 = arith.constant 0 : index
    %c0_53 = arith.constant 0 : index
    %51 = vector.load %arg11[%c0_52, %c0_53] : memref<16x16xf32, #tpu.memory_space<vmem>>, vector<16x16xf32>
    %c0_54 = arith.constant 0 : index
    %c0_55 = arith.constant 0 : index
    %52 = vector.load %arg12[%c0_54, %c0_55] : memref<16x16xf32, #tpu.memory_space<vmem>>, vector<16x16xf32>
    %c0_56 = arith.constant 0 : index
    %c0_57 = arith.constant 0 : index
    %53 = vector.load %arg14[%c0_56, %c0_57] : memref<1x128xf32, #tpu.memory_space<vmem>>, vector<1x128xf32>
    %cst_58 = arith.constant dense<0.000000e+00> : vector<16x64xf32>
    %54 = tpu.matmul %51, %50, %cst_58 {dimension_numbers = #tpu.dot_dimension_numbers<[1], [0], [0], [1], [0, 0, 1, 1], [], []>} : vector<16x16xf32>, vector<16x64xf32>, vector<16x64xf32> -> vector<16x64xf32>
    %cst_59 = arith.constant dense<0.000000e+00> : vector<16x64xf32>
    %55 = tpu.matmul %52, %50, %cst_59 {dimension_numbers = #tpu.dot_dimension_numbers<[1], [0], [0], [1], [0, 0, 1, 1], [], []>} : vector<16x16xf32>, vector<16x64xf32>, vector<16x64xf32> -> vector<16x64xf32>
    %c0_60 = arith.constant 0 : index
    %c0_61 = arith.constant 0 : index
    %c0_62 = arith.constant 0 : index
    %56 = vector.load %arg13[%c0_60, %c0_61, %c0_62] : memref<3x64x128xf32, #tpu.memory_space<vmem>>, vector<1x64x128xf32>
    %57 = vector.shape_cast %56 : vector<1x64x128xf32> to vector<64x128xf32>
    %cst_63 = arith.constant dense<0.000000e+00> : vector<16x128xf32>
    %58 = tpu.matmul %54, %57, %cst_63 {dimension_numbers = #tpu.dot_dimension_numbers<[1], [0], [0], [1], [0, 0, 1, 1], [], []>} : vector<16x64xf32>, vector<64x128xf32>, vector<16x128xf32> -> vector<16x128xf32>
    %c1_64 = arith.constant 1 : index
    %c0_65 = arith.constant 0 : index
    %c0_66 = arith.constant 0 : index
    %59 = vector.load %arg13[%c1_64, %c0_65, %c0_66] : memref<3x64x128xf32, #tpu.memory_space<vmem>>, vector<1x64x128xf32>
    %60 = vector.shape_cast %59 : vector<1x64x128xf32> to vector<64x128xf32>
    %cst_67 = arith.constant dense<0.000000e+00> : vector<16x128xf32>
    %61 = tpu.matmul %50, %60, %cst_67 {dimension_numbers = #tpu.dot_dimension_numbers<[1], [0], [0], [1], [0, 0, 1, 1], [], []>} : vector<16x64xf32>, vector<64x128xf32>, vector<16x128xf32> -> vector<16x128xf32>
    %62 = arith.addf %58, %61 : vector<16x128xf32>
    %c2_68 = arith.constant 2 : index
    %c0_69 = arith.constant 0 : index
    %c0_70 = arith.constant 0 : index
    %63 = vector.load %arg13[%c2_68, %c0_69, %c0_70] : memref<3x64x128xf32, #tpu.memory_space<vmem>>, vector<1x64x128xf32>
    %64 = vector.shape_cast %63 : vector<1x64x128xf32> to vector<64x128xf32>
    %cst_71 = arith.constant dense<0.000000e+00> : vector<16x128xf32>
    %65 = tpu.matmul %55, %64, %cst_71 {dimension_numbers = #tpu.dot_dimension_numbers<[1], [0], [0], [1], [0, 0, 1, 1], [], []>} : vector<16x64xf32>, vector<64x128xf32>, vector<16x128xf32> -> vector<16x128xf32>
    %66 = arith.addf %62, %65 : vector<16x128xf32>
    %67 = vector.broadcast %53 : vector<1x128xf32> to vector<16x128xf32>
    %68 = arith.addf %66, %67 : vector<16x128xf32>
    %cst_72 = arith.constant 0.000000e+00 : f32
    %69 = vector.broadcast %cst_72 : f32 to vector<16x128xf32>
    %70 = arith.maximumf %68, %69 : vector<16x128xf32>
    %c0_73 = arith.constant 0 : index
    %c0_74 = arith.constant 0 : index
    %71 = vector.load %arg11[%c0_73, %c0_74] : memref<16x16xf32, #tpu.memory_space<vmem>>, vector<16x16xf32>
    %c0_75 = arith.constant 0 : index
    %c0_76 = arith.constant 0 : index
    %72 = vector.load %arg12[%c0_75, %c0_76] : memref<16x16xf32, #tpu.memory_space<vmem>>, vector<16x16xf32>
    %c0_77 = arith.constant 0 : index
    %c0_78 = arith.constant 0 : index
    %73 = vector.load %arg16[%c0_77, %c0_78] : memref<1x128xf32, #tpu.memory_space<vmem>>, vector<1x128xf32>
    %cst_79 = arith.constant dense<0.000000e+00> : vector<16x128xf32>
    %74 = tpu.matmul %71, %70, %cst_79 {dimension_numbers = #tpu.dot_dimension_numbers<[1], [0], [0], [1], [0, 0, 1, 1], [], []>} : vector<16x16xf32>, vector<16x128xf32>, vector<16x128xf32> -> vector<16x128xf32>
    %cst_80 = arith.constant dense<0.000000e+00> : vector<16x128xf32>
    %75 = tpu.matmul %72, %70, %cst_80 {dimension_numbers = #tpu.dot_dimension_numbers<[1], [0], [0], [1], [0, 0, 1, 1], [], []>} : vector<16x16xf32>, vector<16x128xf32>, vector<16x128xf32> -> vector<16x128xf32>
    %c0_81 = arith.constant 0 : index
    %c0_82 = arith.constant 0 : index
    %c0_83 = arith.constant 0 : index
    %76 = vector.load %arg15[%c0_81, %c0_82, %c0_83] : memref<3x128x128xf32, #tpu.memory_space<vmem>>, vector<1x128x128xf32>
    %77 = vector.shape_cast %76 : vector<1x128x128xf32> to vector<128x128xf32>
    %cst_84 = arith.constant dense<0.000000e+00> : vector<16x128xf32>
    %78 = tpu.matmul %74, %77, %cst_84 {dimension_numbers = #tpu.dot_dimension_numbers<[1], [0], [0], [1], [0, 0, 1, 1], [], []>} : vector<16x128xf32>, vector<128x128xf32>, vector<16x128xf32> -> vector<16x128xf32>
    %c1_85 = arith.constant 1 : index
    %c0_86 = arith.constant 0 : index
    %c0_87 = arith.constant 0 : index
    %79 = vector.load %arg15[%c1_85, %c0_86, %c0_87] : memref<3x128x128xf32, #tpu.memory_space<vmem>>, vector<1x128x128xf32>
    %80 = vector.shape_cast %79 : vector<1x128x128xf32> to vector<128x128xf32>
    %cst_88 = arith.constant dense<0.000000e+00> : vector<16x128xf32>
    %81 = tpu.matmul %70, %80, %cst_88 {dimension_numbers = #tpu.dot_dimension_numbers<[1], [0], [0], [1], [0, 0, 1, 1], [], []>} : vector<16x128xf32>, vector<128x128xf32>, vector<16x128xf32> -> vector<16x128xf32>
    %82 = arith.addf %78, %81 : vector<16x128xf32>
    %c2_89 = arith.constant 2 : index
    %c0_90 = arith.constant 0 : index
    %c0_91 = arith.constant 0 : index
    %83 = vector.load %arg15[%c2_89, %c0_90, %c0_91] : memref<3x128x128xf32, #tpu.memory_space<vmem>>, vector<1x128x128xf32>
    %84 = vector.shape_cast %83 : vector<1x128x128xf32> to vector<128x128xf32>
    %cst_92 = arith.constant dense<0.000000e+00> : vector<16x128xf32>
    %85 = tpu.matmul %75, %84, %cst_92 {dimension_numbers = #tpu.dot_dimension_numbers<[1], [0], [0], [1], [0, 0, 1, 1], [], []>} : vector<16x128xf32>, vector<128x128xf32>, vector<16x128xf32> -> vector<16x128xf32>
    %86 = arith.addf %82, %85 : vector<16x128xf32>
    %87 = vector.broadcast %73 : vector<1x128xf32> to vector<16x128xf32>
    %88 = arith.addf %86, %87 : vector<16x128xf32>
    %cst_93 = arith.constant 0.000000e+00 : f32
    %89 = vector.broadcast %cst_93 : f32 to vector<16x128xf32>
    %90 = arith.maximumf %88, %89 : vector<16x128xf32>
    %c0_94 = arith.constant 0 : index
    %c0_95 = arith.constant 0 : index
    %91 = vector.load %arg12[%c0_94, %c0_95] : memref<16x16xf32, #tpu.memory_space<vmem>>, vector<16x16xf32>
    %c0_96 = arith.constant 0 : index
    %c0_97 = arith.constant 0 : index
    %92 = vector.load %arg17[%c0_96, %c0_97] : memref<8x16xf32, #tpu.memory_space<vmem>>, vector<8x16xf32>
    %c0_98 = arith.constant 0 : index
    %c0_99 = arith.constant 0 : index
    %93 = vector.load %arg18[%c0_98, %c0_99] : memref<128x128xf32, #tpu.memory_space<vmem>>, vector<128x128xf32>
    %c0_100 = arith.constant 0 : index
    %c0_101 = arith.constant 0 : index
    %94 = vector.load %arg19[%c0_100, %c0_101] : memref<128x64xf32, #tpu.memory_space<vmem>>, vector<128x64xf32>
    %cst_102 = arith.constant dense<0.000000e+00> : vector<16x128xf32>
    %95 = tpu.matmul %91, %90, %cst_102 {dimension_numbers = #tpu.dot_dimension_numbers<[1], [0], [0], [1], [0, 0, 1, 1], [], []>} : vector<16x16xf32>, vector<16x128xf32>, vector<16x128xf32> -> vector<16x128xf32>
    %96 = arith.maximumf %90, %95 : vector<16x128xf32>
    %cst_103 = arith.constant dense<0.000000e+00> : vector<8x128xf32>
    %97 = tpu.matmul %92, %96, %cst_103 {dimension_numbers = #tpu.dot_dimension_numbers<[1], [0], [0], [1], [0, 0, 1, 1], [], []>} : vector<8x16xf32>, vector<16x128xf32>, vector<8x128xf32> -> vector<8x128xf32>
    %cst_104 = arith.constant dense<0.000000e+00> : vector<8x128xf32>
    %98 = tpu.matmul %97, %93, %cst_104 {dimension_numbers = #tpu.dot_dimension_numbers<[1], [0], [0], [1], [0, 0, 1, 1], [], []>} : vector<8x128xf32>, vector<128x128xf32>, vector<8x128xf32> -> vector<8x128xf32>
    %99 = arith.maximumf %97, %98 : vector<8x128xf32>
    %cst_105 = arith.constant dense<0.000000e+00> : vector<8x64xf32>
    %100 = tpu.matmul %99, %94, %cst_105 {dimension_numbers = #tpu.dot_dimension_numbers<[1], [0], [0], [1], [0, 0, 1, 1], [], []>} : vector<8x128xf32>, vector<128x64xf32>, vector<8x64xf32> -> vector<8x64xf32>
    %c0_106 = arith.constant 0 : index
    %c0_107 = arith.constant 0 : index
    %101 = vector.load %arg20[%c0_106, %c0_107] : memref<64x8xf32, #tpu.memory_space<vmem>>, vector<64x8xf32>
    %cst_108 = arith.constant dense<0.000000e+00> : vector<8x8xf32>
    %102 = tpu.matmul %100, %101, %cst_108 {dimension_numbers = #tpu.dot_dimension_numbers<[1], [0], [0], [1], [0, 0, 1, 1], [], []>} : vector<8x64xf32>, vector<64x8xf32>, vector<8x8xf32> -> vector<8x8xf32>
    %c0_109 = arith.constant 0 : index
    %c0_110 = arith.constant 0 : index
    %103 = vector.load %arg21[%c0_109, %c0_110] : memref<8x8xf32, #tpu.memory_space<vmem>>, vector<8x8xf32>
    %104 = arith.mulf %102, %103 : vector<8x8xf32>
    %c0_111 = arith.constant 0 : index
    %c0_112 = arith.constant 0 : index
    %105 = vector.load %arg22[%c0_111, %c0_112] : memref<2x8xf32, #tpu.memory_space<vmem>>, vector<2x8xf32>
    %cst_113 = arith.constant dense<0.000000e+00> : vector<2x8xf32>
    %106 = tpu.matmul %105, %104, %cst_113 {dimension_numbers = #tpu.dot_dimension_numbers<[1], [0], [0], [1], [0, 0, 1, 1], [], []>} : vector<2x8xf32>, vector<8x8xf32>, vector<2x8xf32> -> vector<2x8xf32>
    %c0_114 = arith.constant 0 : index
    %c0_115 = arith.constant 0 : index
    %107 = vector.load %arg23[%c0_114, %c0_115] : memref<8x2xf32, #tpu.memory_space<vmem>>, vector<8x2xf32>
    %cst_116 = arith.constant dense<0.000000e+00> : vector<2x2xf32>
    %108 = tpu.matmul %106, %107, %cst_116 {dimension_numbers = #tpu.dot_dimension_numbers<[1], [0], [0], [1], [0, 0, 1, 1], [], []>} : vector<2x8xf32>, vector<8x2xf32>, vector<2x2xf32> -> vector<2x2xf32>
    %c0_117 = arith.constant 0 : index
    %c0_118 = arith.constant 0 : index
    %109 = vector.load %arg24[%c0_117, %c0_118] : memref<1x2xf32, #tpu.memory_space<vmem>>, vector<1x2xf32>
    %110 = vector.broadcast %109 : vector<1x2xf32> to vector<2x2xf32>
    %111 = arith.addf %108, %110 : vector<2x2xf32>
    %cst_119 = arith.constant dense<0xFF800000> : vector<2xf32>
    %112 = vector.multi_reduction <maximumf>, %111, %cst_119 [1] : vector<2x2xf32> to vector<2xf32>
    %113 = vector.shape_cast %112 : vector<2xf32> to vector<2x1xf32>
    %114 = vector.broadcast %113 : vector<2x1xf32> to vector<2x2xf32>
    %115 = arith.subf %111, %114 : vector<2x2xf32>
    %116 = math.exp %115 : vector<2x2xf32>
    %cst_120 = arith.constant dense<0.000000e+00> : vector<2xf32>
    %117 = vector.multi_reduction <add>, %116, %cst_120 [1] : vector<2x2xf32> to vector<2xf32>
    %118 = vector.shape_cast %117 : vector<2xf32> to vector<2x1xf32>
    %119 = vector.broadcast %118 : vector<2x1xf32> to vector<2x2xf32>
    %120 = arith.divf %116, %119 : vector<2x2xf32>
    %c0_121 = arith.constant 0 : index
    %c0_122 = arith.constant 0 : index
    %121 = vector.load %arg25[%c0_121, %c0_122] : memref<2x2xf32, #tpu.memory_space<vmem>>, vector<2x2xf32>
    tpu.vector_store %arg25[%c0_121, %c0_122], %120 {strides = array<i32>} : memref<2x2xf32, #tpu.memory_space<vmem>>, vector<2x2xf32>,
    return
  }
  func.func @transform_0(%arg0: i32) -> (i32, i32) {
    %c0_i32 = arith.constant 0 : i32
    %c0_i32_0 = arith.constant 0 : i32
    %c0_i32_1 = arith.constant 0 : i32
    return %c0_i32, %c0_i32_0 : i32, i32
  }
  func.func @transform_1(%arg0: i32) -> (i32, i32) {
    %c0_i32 = arith.constant 0 : i32
    %c0_i32_0 = arith.constant 0 : i32
    %c0_i32_1 = arith.constant 0 : i32
    return %c0_i32, %c0_i32_0 : i32, i32
  }
  func.func @transform_2(%arg0: i32) -> (i32, i32) {
    %c0_i32 = arith.constant 0 : i32
    %c0_i32_0 = arith.constant 0 : i32
    %c0_i32_1 = arith.constant 0 : i32
    return %c0_i32, %c0_i32_0 : i32, i32
  }
  func.func @transform_3(%arg0: i32) -> (i32, i32, i32) {
    %c0_i32 = arith.constant 0 : i32
    %c0_i32_0 = arith.constant 0 : i32
    %c0_i32_1 = arith.constant 0 : i32
    %c0_i32_2 = arith.constant 0 : i32
    return %c0_i32, %c0_i32_0, %c0_i32_1 : i32, i32, i32
  }
  func.func @transform_4(%arg0: i32) -> (i32, i32) {
    %c0_i32 = arith.constant 0 : i32
    %c0_i32_0 = arith.constant 0 : i32
    %c0_i32_1 = arith.constant 0 : i32
    return %c0_i32, %c0_i32_0 : i32, i32
  }
  func.func @transform_5(%arg0: i32) -> (i32, i32, i32) {
    %c0_i32 = arith.constant 0 : i32
    %c0_i32_0 = arith.constant 0 : i32
    %c0_i32_1 = arith.constant 0 : i32
    %c0_i32_2 = arith.constant 0 : i32
    return %c0_i32, %c0_i32_0, %c0_i32_1 : i32, i32, i32
  }
  func.func @transform_6(%arg0: i32) -> (i32, i32) {
    %c0_i32 = arith.constant 0 : i32
    %c0_i32_0 = arith.constant 0 : i32
    %c0_i32_1 = arith.constant 0 : i32
    return %c0_i32, %c0_i32_0 : i32, i32
  }
  func.func @transform_7(%arg0: i32) -> (i32, i32) {
    %c0_i32 = arith.constant 0 : i32
    %c0_i32_0 = arith.constant 0 : i32
    %c0_i32_1 = arith.constant 0 : i32
    return %c0_i32, %c0_i32_0 : i32, i32
  }
  func.func @transform_8(%arg0: i32) -> (i32, i32) {
    %c0_i32 = arith.constant 0 : i32
    %c0_i32_0 = arith.constant 0 : i32
    %c0_i32_1 = arith.constant 0 : i32
    return %c0_i32, %c0_i32_0 : i32, i32
  }
  func.func @transform_9(%arg0: i32) -> (i32, i32) {
    %c0_i32 = arith.constant 0 : i32
    %c0_i32_0 = arith.constant 0 : i32
    %c0_i32_1 = arith.constant 0 : i32
    return %c0_i32, %c0_i32_0 : i32, i32
  }
  func.func @transform_10(%arg0: i32) -> (i32, i32) {
    %c0_i32 = arith.constant 0 : i32
    %c0_i32_0 = arith.constant 0 : i32
    %c0_i32_1 = arith.constant 0 : i32
    return %c0_i32, %c0_i32_0 : i32, i32
  }
  func.func @transform_11(%arg0: i32) -> (i32, i32) {
    %c0_i32 = arith.constant 0 : i32
    %c0_i32_0 = arith.constant 0 : i32
    %c0_i32_1 = arith.constant 0 : i32
    return %c0_i32, %c0_i32_0 : i32, i32
  }
  func.func @transform_12(%arg0: i32) -> (i32, i32, i32) {
    %c0_i32 = arith.constant 0 : i32
    %c0_i32_0 = arith.constant 0 : i32
    %c0_i32_1 = arith.constant 0 : i32
    %c0_i32_2 = arith.constant 0 : i32
    return %c0_i32, %c0_i32_0, %c0_i32_1 : i32, i32, i32
  }
  func.func @transform_13(%arg0: i32) -> (i32, i32) {
    %c0_i32 = arith.constant 0 : i32
    %c0_i32_0 = arith.constant 0 : i32
    %c0_i32_1 = arith.constant 0 : i32
    return %c0_i32, %c0_i32_0 : i32, i32
  }
  func.func @transform_14(%arg0: i32) -> (i32, i32, i32) {
    %c0_i32 = arith.constant 0 : i32
    %c0_i32_0 = arith.constant 0 : i32
    %c0_i32_1 = arith.constant 0 : i32
    %c0_i32_2 = arith.constant 0 : i32
    return %c0_i32, %c0_i32_0, %c0_i32_1 : i32, i32, i32
  }
  func.func @transform_15(%arg0: i32) -> (i32, i32) {
    %c0_i32 = arith.constant 0 : i32
    %c0_i32_0 = arith.constant 0 : i32
    %c0_i32_1 = arith.constant 0 : i32
    return %c0_i32, %c0_i32_0 : i32, i32
  }
  func.func @transform_16(%arg0: i32) -> (i32, i32) {
    %c0_i32 = arith.constant 0 : i32
    %c0_i32_0 = arith.constant 0 : i32
    %c0_i32_1 = arith.constant 0 : i32
    return %c0_i32, %c0_i32_0 : i32, i32
  }
  func.func @transform_17(%arg0: i32) -> (i32, i32) {
    %c0_i32 = arith.constant 0 : i32
    %c0_i32_0 = arith.constant 0 : i32
    %c0_i32_1 = arith.constant 0 : i32
    return %c0_i32, %c0_i32_0 : i32, i32
  }
  func.func @transform_18(%arg0: i32) -> (i32, i32) {
    %c0_i32 = arith.constant 0 : i32
    %c0_i32_0 = arith.constant 0 : i32
    %c0_i32_1 = arith.constant 0 : i32
    return %c0_i32, %c0_i32_0 : i32, i32
  }
  func.func @transform_19(%arg0: i32) -> (i32, i32) {
    %c0_i32 = arith.constant 0 : i32
    %c0_i32_0 = arith.constant 0 : i32
    %c0_i32_1 = arith.constant 0 : i32
    return %c0_i32, %c0_i32_0 : i32, i32
  }
  func.func @transform_20(%arg0: i32) -> (i32, i32) {
    %c0_i32 = arith.constant 0 : i32
    %c0_i32_0 = arith.constant 0 : i32
    %c0_i32_1 = arith.constant 0 : i32
    return %c0_i32, %c0_i32_0 : i32, i32
  }
  func.func @transform_21(%arg0: i32) -> (i32, i32) {
    %c0_i32 = arith.constant 0 : i32
    %c0_i32_0 = arith.constant 0 : i32
    %c0_i32_1 = arith.constant 0 : i32
    return %c0_i32, %c0_i32_0 : i32, i32
  }
  func.func @transform_22(%arg0: i32) -> (i32, i32) {
    %c0_i32 = arith.constant 0 : i32
    %c0_i32_0 = arith.constant 0 : i32
    %c0_i32_1 = arith.constant 0 : i32
    return %c0_i32, %c0_i32_0 : i32, i32
  }
  func.func @transform_23(%arg0: i32) -> (i32, i32) {
    %c0_i32 = arith.constant 0 : i32
    %c0_i32_0 = arith.constant 0 : i32
    %c0_i32_1 = arith.constant 0 : i32
    return %c0_i32, %c0_i32_0 : i32, i32
  }
  func.func @transform_24(%arg0: i32) -> (i32, i32) {
    %c0_i32 = arith.constant 0 : i32
    %c0_i32_0 = arith.constant 0 : i32
    %c0_i32_1 = arith.constant 0 : i32
    return %c0_i32, %c0_i32_0 : i32, i32
  }
}

</mosaic_0001>

<llo_original>
// kernel: _lambda_.1
$region0: #{_lambda_.1}
  #allocation0 [shape = 'u32[]', space=smem, size = 0x4, offset = 0x4, fixed_abs, tag = 'smem constant byte address 0x4 - core index']
  #allocation1 [shape = 'u32[72,128]{1,0:T(1,128)}', space=vmem, size = 0x9000, scoped, tag = 'internal scratch']
  %s0 = inlined_call_operand.vmem [shape: f32[32,64], index: 0, kind: input, shape index: {}]
  %s1 = inlined_call_operand.hbm [shape: f32[32,32], index: 1, kind: input, shape index: {}]
  %s2 = inlined_call_operand.vmem [shape: f32[32,32], index: 2, kind: input, shape index: {}]
  %s3 = inlined_call_operand.hbm [shape: f32[3,64,128], index: 3, kind: input, shape index: {}]
  %s4 = inlined_call_operand.hbm [shape: f32[1,128], index: 4, kind: input, shape index: {}]
  %s5 = inlined_call_operand.hbm [shape: f32[3,128,128], index: 5, kind: input, shape index: {}]
  %s6 = inlined_call_operand.hbm [shape: f32[1,128], index: 6, kind: input, shape index: {}]
  %s7 = inlined_call_operand.hbm [shape: f32[16,32], index: 7, kind: input, shape index: {}]
  %s8 = inlined_call_operand.hbm [shape: f32[128,128], index: 8, kind: input, shape index: {}]
  %s9 = inlined_call_operand.hbm [shape: f32[128,64], index: 9, kind: input, shape index: {}]
  %s10 = inlined_call_operand.hbm [shape: f32[16,16], index: 10, kind: input, shape index: {}]
  %s11 = inlined_call_operand.hbm [shape: f32[16,16], index: 11, kind: input, shape index: {}]
  %s12 = inlined_call_operand.hbm [shape: f32[3,64,128], index: 12, kind: input, shape index: {}]
  %s13 = inlined_call_operand.hbm [shape: f32[1,128], index: 13, kind: input, shape index: {}]
  %s14 = inlined_call_operand.vmem [shape: f32[3,128,128], index: 14, kind: input, shape index: {}]
  %s15 = inlined_call_operand.hbm [shape: f32[1,128], index: 15, kind: input, shape index: {}]
  %s16 = inlined_call_operand.hbm [shape: f32[8,16], index: 16, kind: input, shape index: {}]
  %s17 = inlined_call_operand.hbm [shape: f32[128,128], index: 17, kind: input, shape index: {}]
  %s18 = inlined_call_operand.vmem [shape: f32[128,64], index: 18, kind: input, shape index: {}]
  %s19 = inlined_call_operand.hbm [shape: f32[64,8], index: 19, kind: input, shape index: {}]
  %s20 = inlined_call_operand.vmem [shape: f32[8,8], index: 20, kind: input, shape index: {}]
  %s21 = inlined_call_operand.hbm [shape: f32[2,8], index: 21, kind: input, shape index: {}]
  %s22 = inlined_call_operand.vmem [shape: f32[8,2], index: 22, kind: input, shape index: {}]
  %s23 = inlined_call_operand.vmem [shape: f32[1,2], index: 23, kind: input, shape index: {}]
  %s24 = inlined_call_operand.hbm [shape: f32[2,2], index: 24, kind: output, shape index: {}]
  %s25 = sld [smem:[#allocation0]]
  $region174: #{_lambda_.1} parent=0
    _
  %s27 = ssub.s32 1, %s25
  %s28 = scalar_select 0, %s27, %s25
  $region1: #{_lambda_.1} parent=0
    #allocation2 [shape = 'u8[16384]{0}', space=vmem, size = 0x4000, scoped, tag = 'input window, operand 1, single buffered']
    #allocation3 [shape = 's32[1]{0}', space=sflag, size = 0x4, scoped, tag = 'scoped memory for _lambda_.1']
    #allocation4 [shape = 's32[1]{0}', space=sflag, size = 0x4, scoped, tag = 'scoped memory for _lambda_.1']
    #allocation5 [shape = 'u8[98304]{0}', space=vmem, size = 0x18000, scoped, tag = 'input window, operand 3, single buffered']
    #allocation6 [shape = 's32[1]{0}', space=sflag, size = 0x4, scoped, tag = 'scoped memory for _lambda_.1']
    #allocation7 [shape = 'u8[512]{0}', space=vmem, size = 0x400, scoped, tag = 'input window, operand 4, single buffered']
    #allocation8 [shape = 'u8[196608]{0}', space=vmem, size = 0x30000, scoped, tag = 'input window, operand 5, single buffered']
    #allocation9 [shape = 's32[1]{0}', space=sflag, size = 0x4, scoped, tag = 'scoped memory for _lambda_.1']
    #allocation10 [shape = 'u8[512]{0}', space=vmem, size = 0x400, scoped, tag = 'input window, operand 6, single buffered']
    #allocation11 [shape = 'u8[8192]{0}', space=vmem, size = 0x2000, scoped, tag = 'input window, operand 7, single buffered']
    #allocation12 [shape = 's32[1]{0}', space=sflag, size = 0x4, scoped, tag = 'scoped memory for _lambda_.1']
    #allocation13 [shape = 'u8[65536]{0}', space=vmem, size = 0x10000, scoped, tag = 'input window, operand 8, single buffered']
    #allocation14 [shape = 'u8[65536]{0}', space=vmem, size = 0x10000, scoped, tag = 'input window, operand 9, single buffered']
    #allocation15 [shape = 's32[1]{0}', space=sflag, size = 0x4, scoped, tag = 'scoped memory for _lambda_.1']
    #allocation16 [shape = 'u8[8192]{0}', space=vmem, size = 0x2000, scoped, tag = 'input window, operand 10, single buffered']
    #allocation17 [shape = 'u8[8192]{0}', space=vmem, size = 0x2000, scoped, tag = 'input window, operand 11, single buffered']
    #allocation18 [shape = 's32[1]{0}', space=sflag, size = 0x4, scoped, tag = 'scoped memory for _lambda_.1']
    #allocation19 [shape = 'u8[98304]{0}', space=vmem, size = 0x18000, scoped, tag = 'input window, operand 12, single buffered']
    #allocation20 [shape = 'u8[512]{0}', space=vmem, size = 0x400, scoped, tag = 'input window, operand 13, single buffered']
    #allocation21 [shape = 's32[1]{0}', space=sflag, size = 0x4, scoped, tag = 'scoped memory for _lambda_.1']
    #allocation22 [shape = 'u8[512]{0}', space=vmem, size = 0x400, scoped, tag = 'input window, operand 15, single buffered']
    #allocation23 [shape = 'u8[4096]{0}', space=vmem, size = 0x1000, scoped, tag = 'input window, operand 16, single buffered']
    #allocation24 [shape = 's32[1]{0}', space=sflag, size = 0x4, scoped, tag = 'scoped memory for _lambda_.1']
    #allocation25 [shape = 'u8[65536]{0}', space=vmem, size = 0x10000, scoped, tag = 'input window, operand 17, single buffered']
    #allocation26 [shape = 'u8[32768]{0}', space=vmem, size = 0x8000, scoped, tag = 'input window, operand 19, single buffered']
    #allocation27 [shape = 's32[1]{0}', space=sflag, size = 0x4, scoped, tag = 'scoped memory for _lambda_.1']
    #allocation28 [shape = 'u8[1024]{0}', space=vmem, size = 0x400, scoped, tag = 'input window, operand 21, single buffered']
    #allocation29 [shape = 'u8[1024]{0}', space=vmem, size = 0x400, scoped, tag = 'output window, operand 0, single buffered']
    %29 = vsyncpa [#allocation3], 0
    %30 = vsyncpa [#allocation6], 0
    %31 = vsyncpa [#allocation9], 0
    %32 = vsyncpa [#allocation12], 0
    %33 = vsyncpa [#allocation15], 0
    %34 = vsyncpa [#allocation18], 0
    %35 = vsyncpa [#allocation21], 0
    %36 = vsyncpa [#allocation24], 0
    %37 = vsyncpa [#allocation27], 0
    %38 = vsyncpa [#allocation4], 0
    // Predicated region
    $region2: #{_lambda_.1} parent=1 // pred_check
      _
    $region3: #{_lambda_.1} parent=1 // pred_check_branch
      %40 = sbr.rel (0) target = $region5
    $region4: #{_lambda_.1} parent=1 // pred_region
      _
    $region5: #{_lambda_.1} parent=1 // pred_fallthru
      _
    // Predicated region
    $region6: #{_lambda_.1} parent=1 // pred_check
      _
    $region7: #{_lambda_.1} parent=1 // pred_check_branch
      %42 = sbr.rel (0) target = $region9
    $region8: #{_lambda_.1} parent=1 // pred_region
      %44 = vsyncadd [#allocation3], 0
      %s45 = sshll.u32 %s1, 4
      %s46 = int_to_ptr.hbm [resolvable:$true] %s45
      %s47 = sshll.u32 [#allocation2], 4
      %s48 = int_to_ptr.vmem [resolvable:$true] %s47
      %53 = dma.hbm_to_vmem [thread:$0]  %s46, 512, %s48, [#allocation3], 128, 128, 8
    $region9: #{_lambda_.1} parent=1 // pred_fallthru
      _
    // Predicated region
    $region10: #{_lambda_.1} parent=1 // pred_check
      _
    $region11: #{_lambda_.1} parent=1 // pred_check_branch
      %55 = sbr.rel (0) target = $region13
    $region12: #{_lambda_.1} parent=1 // pred_region
      _
    $region13: #{_lambda_.1} parent=1 // pred_fallthru
      _
    // Predicated region
    $region14: #{_lambda_.1} parent=1 // pred_check
      _
    $region15: #{_lambda_.1} parent=1 // pred_check_branch
      %57 = sbr.rel (0) target = $region17
    $region16: #{_lambda_.1} parent=1 // pred_region
      %59 = vsyncadd [#allocation6], 0
      %s60 = sshll.u32 %s3, 4
      %s61 = int_to_ptr.hbm [resolvable:$true] %s60
      %s62 = sshll.u32 [#allocation5], 4
      %s63 = int_to_ptr.vmem [resolvable:$true] %s62
      %68 = dma.hbm_to_vmem [thread:$0]  %s61, 3072, %s63, [#allocation6], 128, 128, 8
    $region17: #{_lambda_.1} parent=1 // pred_fallthru
      _
    // Predicated region
    $region18: #{_lambda_.1} parent=1 // pred_check
      _
    $region19: #{_lambda_.1} parent=1 // pred_check_branch
      %70 = sbr.rel (0) target = $region21
    $region20: #{_lambda_.1} parent=1 // pred_region
      %72 = vsyncadd [#allocation6], 0
      %s74 = sshll.u32 %s4, 4
      %s75 = int_to_ptr.hbm [resolvable:$true] %s74
      %s76 = sshll.u32 [#allocation7], 4
      %s77 = int_to_ptr.vmem [resolvable:$true] %s76
      %79 = dma.hbm_to_vmem [thread:$0]  %s75, 16, %s77, [#allocation6]
    $region21: #{_lambda_.1} parent=1 // pred_fallthru
      _
    // Predicated region
    $region22: #{_lambda_.1} parent=1 // pred_check
      _
    $region23: #{_lambda_.1} parent=1 // pred_check_branch
      %81 = sbr.rel (0) target = $region25
    $region24: #{_lambda_.1} parent=1 // pred_region
      %83 = vsyncadd [#allocation9], 0
      %s84 = sshll.u32 %s5, 4
      %s85 = int_to_ptr.hbm [resolvable:$true] %s84
      %s86 = sshll.u32 [#allocation8], 4
      %s87 = int_to_ptr.vmem [resolvable:$true] %s86
      %92 = dma.hbm_to_vmem [thread:$0]  %s85, 6144, %s87, [#allocation9], 128, 128, 8
    $region25: #{_lambda_.1} parent=1 // pred_fallthru
      _
    // Predicated region
    $region26: #{_lambda_.1} parent=1 // pred_check
      _
    $region27: #{_lambda_.1} parent=1 // pred_check_branch
      %94 = sbr.rel (0) target = $region29
    $region28: #{_lambda_.1} parent=1 // pred_region
      %96 = vsyncadd [#allocation9], 0
      %s98 = sshll.u32 %s6, 4
      %s99 = int_to_ptr.hbm [resolvable:$true] %s98
      %s100 = sshll.u32 [#allocation10], 4
      %s101 = int_to_ptr.vmem [resolvable:$true] %s100
      %103 = dma.hbm_to_vmem [thread:$0]  %s99, 16, %s101, [#allocation9]
    $region29: #{_lambda_.1} parent=1 // pred_fallthru
      _
    // Predicated region
    $region30: #{_lambda_.1} parent=1 // pred_check
      _
    $region31: #{_lambda_.1} parent=1 // pred_check_branch
      %105 = sbr.rel (0) target = $region33
    $region32: #{_lambda_.1} parent=1 // pred_region
      %107 = vsyncadd [#allocation12], 0
      %s108 = sshll.u32 %s7, 4
      %s109 = int_to_ptr.hbm [resolvable:$true] %s108
      %s110 = sshll.u32 [#allocation11], 4
      %s111 = int_to_ptr.vmem [resolvable:$true] %s110
      %116 = dma.hbm_to_vmem [thread:$0]  %s109, 256, %s111, [#allocation12], 128, 128, 8
    $region33: #{_lambda_.1} parent=1 // pred_fallthru
      _
    // Predicated region
    $region34: #{_lambda_.1} parent=1 // pred_check
      _
    $region35: #{_lambda_.1} parent=1 // pred_check_branch
      %118 = sbr.rel (0) target = $region37
    $region36: #{_lambda_.1} parent=1 // pred_region
      %120 = vsyncadd [#allocation12], 0
      %s121 = sshll.u32 %s8, 4
      %s122 = int_to_ptr.hbm [resolvable:$true] %s121
      %s123 = sshll.u32 [#allocation13], 4
      %s124 = int_to_ptr.vmem [resolvable:$true] %s123
      %129 = dma.hbm_to_vmem [thread:$0]  %s122, 2048, %s124, [#allocation12], 128, 128, 8
    $region37: #{_lambda_.1} parent=1 // pred_fallthru
      _
    // Predicated region
    $region38: #{_lambda_.1} parent=1 // pred_check
      _
    $region39: #{_lambda_.1} parent=1 // pred_check_branch
      %131 = sbr.rel (0) target = $region41
    $region40: #{_lambda_.1} parent=1 // pred_region
      %133 = vsyncadd [#allocation15], 0
      %s134 = sshll.u32 %s9, 4
      %s135 = int_to_ptr.hbm [resolvable:$true] %s134
      %s136 = sshll.u32 [#allocation14], 4
      %s137 = int_to_ptr.vmem [resolvable:$true] %s136
      %142 = dma.hbm_to_vmem [thread:$0]  %s135, 2048, %s137, [#allocation15], 128, 128, 8
    $region41: #{_lambda_.1} parent=1 // pred_fallthru
      _
    // Predicated region
    $region42: #{_lambda_.1} parent=1 // pred_check
      _
    $region43: #{_lambda_.1} parent=1 // pred_check_branch
      %144 = sbr.rel (0) target = $region45
    $region44: #{_lambda_.1} parent=1 // pred_region
      %146 = vsyncadd [#allocation15], 0
      %s147 = sshll.u32 %s10, 4
      %s148 = int_to_ptr.hbm [resolvable:$true] %s147
      %s149 = sshll.u32 [#allocation16], 4
      %s150 = int_to_ptr.vmem [resolvable:$true] %s149
      %155 = dma.hbm_to_vmem [thread:$0]  %s148, 256, %s150, [#allocation15], 128, 128, 8
    $region45: #{_lambda_.1} parent=1 // pred_fallthru
      _
    // Predicated region
    $region46: #{_lambda_.1} parent=1 // pred_check
      _
    $region47: #{_lambda_.1} parent=1 // pred_check_branch
      %157 = sbr.rel (0) target = $region49
    $region48: #{_lambda_.1} parent=1 // pred_region
      %159 = vsyncadd [#allocation18], 0
      %s160 = sshll.u32 %s11, 4
      %s161 = int_to_ptr.hbm [resolvable:$true] %s160
      %s162 = sshll.u32 [#allocation17], 4
      %s163 = int_to_ptr.vmem [resolvable:$true] %s162
      %168 = dma.hbm_to_vmem [thread:$0]  %s161, 256, %s163, [#allocation18], 128, 128, 8
    $region49: #{_lambda_.1} parent=1 // pred_fallthru
      _
    // Predicated region
    $region50: #{_lambda_.1} parent=1 // pred_check
      _
    $region51: #{_lambda_.1} parent=1 // pred_check_branch
      %170 = sbr.rel (0) target = $region53
    $region52: #{_lambda_.1} parent=1 // pred_region
      %172 = vsyncadd [#allocation18], 0
      %s173 = sshll.u32 %s12, 4
      %s174 = int_to_ptr.hbm [resolvable:$true] %s173
      %s175 = sshll.u32 [#allocation19], 4
      %s176 = int_to_ptr.vmem [resolvable:$true] %s175
      %181 = dma.hbm_to_vmem [thread:$0]  %s174, 3072, %s176, [#allocation18], 128, 128, 8
    $region53: #{_lambda_.1} parent=1 // pred_fallthru
      _
    // Predicated region
    $region54: #{_lambda_.1} parent=1 // pred_check
      _
    $region55: #{_lambda_.1} parent=1 // pred_check_branch
      %183 = sbr.rel (0) target = $region57
    $region56: #{_lambda_.1} parent=1 // pred_region
      %185 = vsyncadd [#allocation21], 0
      %s187 = sshll.u32 %s13, 4
      %s188 = int_to_ptr.hbm [resolvable:$true] %s187
      %s189 = sshll.u32 [#allocation20], 4
      %s190 = int_to_ptr.vmem [resolvable:$true] %s189
      %192 = dma.hbm_to_vmem [thread:$0]  %s188, 16, %s190, [#allocation21]
    $region57: #{_lambda_.1} parent=1 // pred_fallthru
      _
    // Predicated region
    $region58: #{_lambda_.1} parent=1 // pred_check
      _
    $region59: #{_lambda_.1} parent=1 // pred_check_branch
      %194 = sbr.rel (0) target = $region61
    $region60: #{_lambda_.1} parent=1 // pred_region
      _
    $region61: #{_lambda_.1} parent=1 // pred_fallthru
      _
    // Predicated region
    $region62: #{_lambda_.1} parent=1 // pred_check
      _
    $region63: #{_lambda_.1} parent=1 // pred_check_branch
      %196 = sbr.rel (0) target = $region65
    $region64: #{_lambda_.1} parent=1 // pred_region
      %198 = vsyncadd [#allocation21], 0
      %s200 = sshll.u32 %s15, 4
      %s201 = int_to_ptr.hbm [resolvable:$true] %s200
      %s202 = sshll.u32 [#allocation22], 4
      %s203 = int_to_ptr.vmem [resolvable:$true] %s202
      %205 = dma.hbm_to_vmem [thread:$0]  %s201, 16, %s203, [#allocation21]
    $region65: #{_lambda_.1} parent=1 // pred_fallthru
      _
    // Predicated region
    $region66: #{_lambda_.1} parent=1 // pred_check
      _
    $region67: #{_lambda_.1} parent=1 // pred_check_branch
      %207 = sbr.rel (0) target = $region69
    $region68: #{_lambda_.1} parent=1 // pred_region
      %209 = vsyncadd [#allocation24], 0
      %s211 = sshll.u32 %s16, 4
      %s212 = int_to_ptr.hbm [resolvable:$true] %s211
      %s213 = sshll.u32 [#allocation23], 4
      %s214 = int_to_ptr.vmem [resolvable:$true] %s213
      %216 = dma.hbm_to_vmem [thread:$0]  %s212, 128, %s214, [#allocation24]
    $region69: #{_lambda_.1} parent=1 // pred_fallthru
      _
    // Predicated region
    $region70: #{_lambda_.1} parent=1 // pred_check
      _
    $region71: #{_lambda_.1} parent=1 // pred_check_branch
      %218 = sbr.rel (0) target = $region73
    $region72: #{_lambda_.1} parent=1 // pred_region
      %220 = vsyncadd [#allocation24], 0
      %s221 = sshll.u32 %s17, 4
      %s222 = int_to_ptr.hbm [resolvable:$true] %s221
      %s223 = sshll.u32 [#allocation25], 4
      %s224 = int_to_ptr.vmem [resolvable:$true] %s223
      %229 = dma.hbm_to_vmem [thread:$0]  %s222, 2048, %s224, [#allocation24], 128, 128, 8
    $region73: #{_lambda_.1} parent=1 // pred_fallthru
      _
    // Predicated region
    $region74: #{_lambda_.1} parent=1 // pred_check
      _
    $region75: #{_lambda_.1} parent=1 // pred_check_branch
      %231 = sbr.rel (0) target = $region77
    $region76: #{_lambda_.1} parent=1 // pred_region
      _
    $region77: #{_lambda_.1} parent=1 // pred_fallthru
      _
    // Predicated region
    $region78: #{_lambda_.1} parent=1 // pred_check
      _
    $region79: #{_lambda_.1} parent=1 // pred_check_branch
      %233 = sbr.rel (0) target = $region81
    $region80: #{_lambda_.1} parent=1 // pred_region
      %235 = vsyncadd [#allocation27], 0
      %s236 = sshll.u32 %s19, 4
      %s237 = int_to_ptr.hbm [resolvable:$true] %s236
      %s238 = sshll.u32 [#allocation26], 4
      %s239 = int_to_ptr.vmem [resolvable:$true] %s238
      %244 = dma.hbm_to_vmem [thread:$0]  %s237, 1024, %s239, [#allocation27], 128, 128, 8
    $region81: #{_lambda_.1} parent=1 // pred_fallthru
      _
    // Predicated region
    $region82: #{_lambda_.1} parent=1 // pred_check
      _
    $region83: #{_lambda_.1} parent=1 // pred_check_branch
      %246 = sbr.rel (0) target = $region85
    $region84: #{_lambda_.1} parent=1 // pred_region
      _
    $region85: #{_lambda_.1} parent=1 // pred_fallthru
      _
    // Predicated region
    $region86: #{_lambda_.1} parent=1 // pred_check
      _
    $region87: #{_lambda_.1} parent=1 // pred_check_branch
      %248 = sbr.rel (0) target = $region89
    $region88: #{_lambda_.1} parent=1 // pred_region
      %250 = vsyncadd [#allocation27], 0
      %s252 = sshll.u32 %s21, 4
      %s253 = int_to_ptr.hbm [resolvable:$true] %s252
      %s254 = sshll.u32 [#allocation28], 4
      %s255 = int_to_ptr.vmem [resolvable:$true] %s254
      %257 = dma.hbm_to_vmem [thread:$0]  %s253, 32, %s255, [#allocation27]
    $region89: #{_lambda_.1} parent=1 // pred_fallthru
      _
    // Predicated region
    $region90: #{_lambda_.1} parent=1 // pred_check
      _
    $region91: #{_lambda_.1} parent=1 // pred_check_branch
      %259 = sbr.rel (0) target = $region93
    $region92: #{_lambda_.1} parent=1 // pred_region
      _
    $region93: #{_lambda_.1} parent=1 // pred_fallthru
      _
    // Predicated region
    $region94: #{_lambda_.1} parent=1 // pred_check
      _
    $region95: #{_lambda_.1} parent=1 // pred_check_branch
      %261 = sbr.rel (0) target = $region97
    $region96: #{_lambda_.1} parent=1 // pred_region
      _
    $region97: #{_lambda_.1} parent=1 // pred_fallthru
      _
    // Predicated region
    $region98: #{_lambda_.1} parent=1 // pred_check
      _
    $region99: #{_lambda_.1} parent=1 // pred_check_branch
      %263 = sbr.rel (0) target = $region101
    $region100: #{_lambda_.1} parent=1 // pred_region
      %265 = dma.done [#allocation3], 512
    $region101: #{_lambda_.1} parent=1 // pred_fallthru
      _
    // Predicated region
    $region102: #{_lambda_.1} parent=1 // pred_check
      _
    $region103: #{_lambda_.1} parent=1 // pred_check_branch
      %267 = sbr.rel (0) target = $region105
    $region104: #{_lambda_.1} parent=1 // pred_region
      %269 = dma.done [#allocation6], 3072
    $region105: #{_lambda_.1} parent=1 // pred_fallthru
      _
    // Predicated region
    $region106: #{_lambda_.1} parent=1 // pred_check
      _
    $region107: #{_lambda_.1} parent=1 // pred_check_branch
      %271 = sbr.rel (0) target = $region109
    $region108: #{_lambda_.1} parent=1 // pred_region
      %273 = dma.done [#allocation6], 16
    $region109: #{_lambda_.1} parent=1 // pred_fallthru
      _
    // Predicated region
    $region110: #{_lambda_.1} parent=1 // pred_check
      _
    $region111: #{_lambda_.1} parent=1 // pred_check_branch
      %275 = sbr.rel (0) target = $region113
    $region112: #{_lambda_.1} parent=1 // pred_region
      %277 = dma.done [#allocation9], 6144
    $region113: #{_lambda_.1} parent=1 // pred_fallthru
      _
    // Predicated region
    $region114: #{_lambda_.1} parent=1 // pred_check
      _
    $region115: #{_lambda_.1} parent=1 // pred_check_branch
      %279 = sbr.rel (0) target = $region117
    $region116: #{_lambda_.1} parent=1 // pred_region
      %281 = dma.done [#allocation9], 16
    $region117: #{_lambda_.1} parent=1 // pred_fallthru
      _
    // Predicated region
    $region118: #{_lambda_.1} parent=1 // pred_check
      _
    $region119: #{_lambda_.1} parent=1 // pred_check_branch
      %283 = sbr.rel (0) target = $region121
    $region120: #{_lambda_.1} parent=1 // pred_region
      %285 = dma.done [#allocation12], 256
    $region121: #{_lambda_.1} parent=1 // pred_fallthru
      _
    // Predicated region
    $region122: #{_lambda_.1} parent=1 // pred_check
      _
    $region123: #{_lambda_.1} parent=1 // pred_check_branch
      %287 = sbr.rel (0) target = $region125
    $region124: #{_lambda_.1} parent=1 // pred_region
      %289 = dma.done [#allocation12], 2048
    $region125: #{_lambda_.1} parent=1 // pred_fallthru
      _
    // Predicated region
    $region126: #{_lambda_.1} parent=1 // pred_check
      _
    $region127: #{_lambda_.1} parent=1 // pred_check_branch
      %291 = sbr.rel (0) target = $region129
    $region128: #{_lambda_.1} parent=1 // pred_region
      %293 = dma.done [#allocation15], 2048
    $region129: #{_lambda_.1} parent=1 // pred_fallthru
      _
    // Predicated region
    $region130: #{_lambda_.1} parent=1 // pred_check
      _
    $region131: #{_lambda_.1} parent=1 // pred_check_branch
      %295 = sbr.rel (0) target = $region133
    $region132: #{_lambda_.1} parent=1 // pred_region
      %297 = dma.done [#allocation15], 256
    $region133: #{_lambda_.1} parent=1 // pred_fallthru
      _
    // Predicated region
    $region134: #{_lambda_.1} parent=1 // pred_check
      _
    $region135: #{_lambda_.1} parent=1 // pred_check_branch
      %299 = sbr.rel (0) target = $region137
    $region136: #{_lambda_.1} parent=1 // pred_region
      %301 = dma.done [#allocation18], 256
    $region137: #{_lambda_.1} parent=1 // pred_fallthru
      _
    // Predicated region
    $region138: #{_lambda_.1} parent=1 // pred_check
      _
    $region139: #{_lambda_.1} parent=1 // pred_check_branch
      %303 = sbr.rel (0) target = $region141
    $region140: #{_lambda_.1} parent=1 // pred_region
      %305 = dma.done [#allocation18], 3072
    $region141: #{_lambda_.1} parent=1 // pred_fallthru
      _
    // Predicated region
    $region142: #{_lambda_.1} parent=1 // pred_check
      _
    $region143: #{_lambda_.1} parent=1 // pred_check_branch
      %307 = sbr.rel (0) target = $region145
    $region144: #{_lambda_.1} parent=1 // pred_region
      %309 = dma.done [#allocation21], 16
    $region145: #{_lambda_.1} parent=1 // pred_fallthru
      _
    // Predicated region
    $region146: #{_lambda_.1} parent=1 // pred_check
      _
    $region147: #{_lambda_.1} parent=1 // pred_check_branch
      %311 = sbr.rel (0) target = $region149
    $region148: #{_lambda_.1} parent=1 // pred_region
      %313 = dma.done [#allocation21], 16
    $region149: #{_lambda_.1} parent=1 // pred_fallthru
      _
    // Predicated region
    $region150: #{_lambda_.1} parent=1 // pred_check
      _
    $region151: #{_lambda_.1} parent=1 // pred_check_branch
      %315 = sbr.rel (0) target = $region153
    $region152: #{_lambda_.1} parent=1 // pred_region
      %317 = dma.done [#allocation24], 128
    $region153: #{_lambda_.1} parent=1 // pred_fallthru
      _
    // Predicated region
    $region154: #{_lambda_.1} parent=1 // pred_check
      _
    $region155: #{_lambda_.1} parent=1 // pred_check_branch
      %319 = sbr.rel (0) target = $region157
    $region156: #{_lambda_.1} parent=1 // pred_region
      %321 = dma.done [#allocation24], 2048
    $region157: #{_lambda_.1} parent=1 // pred_fallthru
      _
    // Predicated region
    $region158: #{_lambda_.1} parent=1 // pred_check
      _
    $region159: #{_lambda_.1} parent=1 // pred_check_branch
      %323 = sbr.rel (0) target = $region161
    $region160: #{_lambda_.1} parent=1 // pred_region
      %325 = dma.done [#allocation27], 1024
    $region161: #{_lambda_.1} parent=1 // pred_fallthru
      _
    // Predicated region
    $region162: #{_lambda_.1} parent=1 // pred_check
      _
    $region163: #{_lambda_.1} parent=1 // pred_check_branch
      %327 = sbr.rel (0) target = $region165
    $region164: #{_lambda_.1} parent=1 // pred_region
      %329 = dma.done [#allocation27], 32
    $region165: #{_lambda_.1} parent=1 // pred_fallthru
      _
    %v330 = vld [vmem:[%s0] sm:$0xff]
    %v331 = vld [vmem:[%s0 + $0x8] sm:$0xff]
    %v332 = vld [vmem:[%s0 + $0x10] sm:$0xff]
    %v333 = vld [vmem:[%s0 + $0x18] sm:$0xff]
    %v334 = vld [vmem:[#allocation2] sm:$0xff]
    %v335 = vld [vmem:[#allocation2 + $0x8] sm:$0xff]
    %v336 = vld [vmem:[#allocation2 + $0x10] sm:$0xff]
    %v337 = vld [vmem:[#allocation2 + $0x18] sm:$0xff]
    %v338 = vld [vmem:[%s2] sm:$0xff]
    %v339 = vld [vmem:[%s2 + $0x8] sm:$0xff]
    %v340 = vld [vmem:[%s2 + $0x10] sm:$0xff]
    %v341 = vld [vmem:[%s2 + $0x18] sm:$0xff]
    %v342 = vld [vmem:[#allocation7] sm:$0x1]
    %vm343 = vcmask 261120
    %v345 = vsel %vm343, %v334, 0
    %v348 = vsel %vm343, %v335, 0
    %v351 = vsel %vm343, %v336, 0
    %v354 = vsel %vm343, %v337, 0
    %356 = vmatpush.msra.mxu0 0.0
    %357 = vmatpush.msra.mxu0 0.0
    %358 = vmatpush.msra.mxu0 0.0
    %359 = vmatpush.msra.mxu0 0.0
    %360 = vmatpush.msra.mxu0 0.0
    %361 = vmatpush.msra.mxu0 0.0
    %362 = vmatpush.msra.mxu0 0.0
    %363 = vmatpush.msra.mxu0 0.0
    %364 = vmatpush.msra.mxu0 0.0
    %365 = vmatpush.msra.mxu0 0.0
    %366 = vmatpush.msra.mxu0 0.0
    %367 = vmatpush.msra.mxu0 0.0
    %368 = vmatpush.msra.mxu0 %v333
    %369 = vmatpush.msra.mxu0 %v332
    %370 = vmatpush.msra.mxu0 %v331
    %371 = vmatpush.msra.mxu0 %v330
    %372 = vmatmul.f32.gmra.mxu0 %v345
    %v373 = vpop.f32.mrf.mxu0
    %v374 = vadd.f32 0.0, %v373
    %375 = vmatmul.f32.gmra.mxu0 %v348
    %v376 = vpop.f32.mrf.mxu0
    %v377 = vadd.f32 0.0, %v376
    %378 = vmatmul.f32.gmra.mxu0 %v351
    %v379 = vpop.f32.mrf.mxu0
    %v380 = vadd.f32 0.0, %v379
    %381 = vmatmul.f32.gmra.mxu0 %v354
    %v382 = vpop.f32.mrf.mxu0
    %v383 = vadd.f32 0.0, %v382
    %384 = vdwg.mxu0
    %v386 = vsel %vm343, %v338, 0
    %v389 = vsel %vm343, %v339, 0
    %v392 = vsel %vm343, %v340, 0
    %v395 = vsel %vm343, %v341, 0
    %397 = vmatpush.msra.mxu0 0.0
    %398 = vmatpush.msra.mxu0 0.0
    %399 = vmatpush.msra.mxu0 0.0
    %400 = vmatpush.msra.mxu0 0.0
    %401 = vmatpush.msra.mxu0 0.0
    %402 = vmatpush.msra.mxu0 0.0
    %403 = vmatpush.msra.mxu0 0.0
    %404 = vmatpush.msra.mxu0 0.0
    %405 = vmatpush.msra.mxu0 0.0
    %406 = vmatpush.msra.mxu0 0.0
    %407 = vmatpush.msra.mxu0 0.0
    %408 = vmatpush.msra.mxu0 0.0
    %409 = vmatpush.msra.mxu0 %v333
    %410 = vmatpush.msra.mxu0 %v332
    %411 = vmatpush.msra.mxu0 %v331
    %412 = vmatpush.msra.mxu0 %v330
    %413 = vmatmul.f32.gmra.mxu0 %v386
    %v414 = vpop.f32.mrf.mxu0
    %v415 = vadd.f32 0.0, %v414
    %416 = vmatmul.f32.gmra.mxu0 %v389
    %v417 = vpop.f32.mrf.mxu0
    %v418 = vadd.f32 0.0, %v417
    %419 = vmatmul.f32.gmra.mxu0 %v392
    %v420 = vpop.f32.mrf.mxu0
    %v421 = vadd.f32 0.0, %v420
    %422 = vmatmul.f32.gmra.mxu0 %v395
    %v423 = vpop.f32.mrf.mxu0
    %v424 = vadd.f32 0.0, %v423
    %425 = vdwg.mxu0
    %v426 = vld [vmem:[#allocation5] sm:$0xff]
    %v427 = vld [vmem:[#allocation5 + $0x8] sm:$0xff]
    %v428 = vld [vmem:[#allocation5 + $0x10] sm:$0xff]
    %v429 = vld [vmem:[#allocation5 + $0x18] sm:$0xff]
    %v430 = vld [vmem:[#allocation5 + $0x20] sm:$0xff]
    %v431 = vld [vmem:[#allocation5 + $0x28] sm:$0xff]
    %v432 = vld [vmem:[#allocation5 + $0x30] sm:$0xff]
    %v433 = vld [vmem:[#allocation5 + $0x38] sm:$0xff]
    %s434 = scalar_lea.vmem [#allocation5], 64
    %v435 = vld [vmem:[%s434] sm:$0xff]
    %v436 = vld [vmem:[%s434 + $0x8] sm:$0xff]
    %v437 = vld [vmem:[%s434 + $0x10] sm:$0xff]
    %v438 = vld [vmem:[%s434 + $0x18] sm:$0xff]
    %v439 = vld [vmem:[%s434 + $0x20] sm:$0xff]
    %v440 = vld [vmem:[%s434 + $0x28] sm:$0xff]
    %v441 = vld [vmem:[%s434 + $0x30] sm:$0xff]
    %v442 = vld [vmem:[%s434 + $0x38] sm:$0xff]
    %vm443 = vcmask 523264
    %v445 = vsel %vm443, %v330, 0
    %v448 = vsel %vm443, %v331, 0
    %v451 = vsel %vm443, %v332, 0
    %v454 = vsel %vm443, %v333, 0
    %456 = vmatpush.msra.mxu0 0.0
    %457 = vmatpush.msra.mxu0 0.0
    %458 = vmatpush.msra.mxu0 0.0
    %459 = vmatpush.msra.mxu0 0.0
    %460 = vmatpush.msra.mxu0 0.0
    %461 = vmatpush.msra.mxu0 0.0
    %462 = vmatpush.msra.mxu0 0.0
    %463 = vmatpush.msra.mxu0 0.0
    %464 = vmatpush.msra.mxu0 %v442
    %465 = vmatpush.msra.mxu0 %v441
    %466 = vmatpush.msra.mxu0 %v440
    %467 = vmatpush.msra.mxu0 %v439
    %468 = vmatpush.msra.mxu0 %v438
    %469 = vmatpush.msra.mxu0 %v437
    %470 = vmatpush.msra.mxu0 %v436
    %471 = vmatpush.msra.mxu0 %v435
    %472 = vmatmul.f32.gmra.mxu0 %v445
    %v473 = vpop.f32.mrf.mxu0
    %v474 = vadd.f32 0.0, %v473
    %475 = vmatmul.f32.gmra.mxu0 %v448
    %v476 = vpop.f32.mrf.mxu0
    %v477 = vadd.f32 0.0, %v476
    %478 = vmatmul.f32.gmra.mxu0 %v451
    %v479 = vpop.f32.mrf.mxu0
    %v480 = vadd.f32 0.0, %v479
    %481 = vmatmul.f32.gmra.mxu0 %v454
    %v482 = vpop.f32.mrf.mxu0
    %v483 = vadd.f32 0.0, %v482
    %484 = vdwg.mxu0
    %v486 = vsel %vm443, %v374, 0
    %v489 = vsel %vm443, %v377, 0
    %v492 = vsel %vm443, %v380, 0
    %v495 = vsel %vm443, %v383, 0
    %497 = vmatpush.msra.mxu0 0.0
    %498 = vmatpush.msra.mxu0 0.0
    %499 = vmatpush.msra.mxu0 0.0
    %500 = vmatpush.msra.mxu0 0.0
    %501 = vmatpush.msra.mxu0 0.0
    %502 = vmatpush.msra.mxu0 0.0
    %503 = vmatpush.msra.mxu0 0.0
    %504 = vmatpush.msra.mxu0 0.0
    %505 = vmatpush.msra.mxu0 %v433
    %506 = vmatpush.msra.mxu0 %v432
    %507 = vmatpush.msra.mxu0 %v431
    %508 = vmatpush.msra.mxu0 %v430
    %509 = vmatpush.msra.mxu0 %v429
    %510 = vmatpush.msra.mxu0 %v428
    %511 = vmatpush.msra.mxu0 %v427
    %512 = vmatpush.msra.mxu0 %v426
    %513 = vmatmul.f32.gmra.mxu0 %v486
    %v514 = vpop.f32.mrf.mxu0
    %v515 = vadd.f32 %v474, %v514
    %516 = vmatmul.f32.gmra.mxu0 %v489
    %v517 = vpop.f32.mrf.mxu0
    %v518 = vadd.f32 %v477, %v517
    %519 = vmatmul.f32.gmra.mxu0 %v492
    %v520 = vpop.f32.mrf.mxu0
    %v521 = vadd.f32 %v480, %v520
    %522 = vmatmul.f32.gmra.mxu0 %v495
    %v523 = vpop.f32.mrf.mxu0
    %v524 = vadd.f32 %v483, %v523
    %525 = vdwg.mxu0
    %s526 = scalar_lea.vmem [#allocation5], 128
    %v527 = vld [vmem:[%s526] sm:$0xff]
    %v528 = vld [vmem:[%s526 + $0x8] sm:$0xff]
    %v529 = vld [vmem:[%s526 + $0x10] sm:$0xff]
    %v530 = vld [vmem:[%s526 + $0x18] sm:$0xff]
    %v531 = vld [vmem:[%s526 + $0x20] sm:$0xff]
    %v532 = vld [vmem:[%s526 + $0x28] sm:$0xff]
    %v533 = vld [vmem:[%s526 + $0x30] sm:$0xff]
    %v534 = vld [vmem:[%s526 + $0x38] sm:$0xff]
    %v536 = vsel %vm443, %v415, 0
    %v539 = vsel %vm443, %v418, 0
    %v542 = vsel %vm443, %v421, 0
    %v545 = vsel %vm443, %v424, 0
    %547 = vmatpush.msra.mxu0 0.0
    %548 = vmatpush.msra.mxu0 0.0
    %549 = vmatpush.msra.mxu0 0.0
    %550 = vmatpush.msra.mxu0 0.0
    %551 = vmatpush.msra.mxu0 0.0
    %552 = vmatpush.msra.mxu0 0.0
    %553 = vmatpush.msra.mxu0 0.0
    %554 = vmatpush.msra.mxu0 0.0
    %555 = vmatpush.msra.mxu0 %v534
    %556 = vmatpush.msra.mxu0 %v533
    %557 = vmatpush.msra.mxu0 %v532
    %558 = vmatpush.msra.mxu0 %v531
    %559 = vmatpush.msra.mxu0 %v530
    %560 = vmatpush.msra.mxu0 %v529
    %561 = vmatpush.msra.mxu0 %v528
    %562 = vmatpush.msra.mxu0 %v527
    %563 = vmatmul.f32.gmra.mxu0 %v536
    %v564 = vpop.f32.mrf.mxu0
    %v565 = vadd.f32 0.0, %v564
    %566 = vmatmul.f32.gmra.mxu0 %v539
    %v567 = vpop.f32.mrf.mxu0
    %v568 = vadd.f32 0.0, %v567
    %569 = vmatmul.f32.gmra.mxu0 %v542
    %v570 = vpop.f32.mrf.mxu0
    %v571 = vadd.f32 0.0, %v570
    %572 = vmatmul.f32.gmra.mxu0 %v545
    %v573 = vpop.f32.mrf.mxu0
    %v574 = vadd.f32 0.0, %v573
    %575 = vdwg.mxu0
    %v576 = vadd.f32 %v515, %v565
    %v577 = vadd.f32 %v518, %v568
    %v578 = vadd.f32 %v521, %v571
    %v579 = vadd.f32 %v524, %v574
    %v581 = vperm.slane %v342, 0
    %v583 = vadd.f32 %v576, %v581
    %v584 = vadd.f32 %v577, %v581
    %v585 = vadd.f32 %v578, %v581
    %v586 = vadd.f32 %v579, %v581
    %v587 = vmax.f32 %v583, 0.0
    %v588 = vmax.f32 %v584, 0.0
    %v589 = vmax.f32 %v585, 0.0
    %v590 = vmax.f32 %v586, 0.0
    %v591 = vld [vmem:[#allocation10] sm:$0x1]
    %592 = vmatpush.msra.mxu0 0.0
    %593 = vmatpush.msra.mxu0 0.0
    %594 = vmatpush.msra.mxu0 0.0
    %595 = vmatpush.msra.mxu0 0.0
    %596 = vmatpush.msra.mxu0 0.0
    %597 = vmatpush.msra.mxu0 0.0
    %598 = vmatpush.msra.mxu0 0.0
    %599 = vmatpush.msra.mxu0 0.0
    %600 = vmatpush.msra.mxu0 0.0
    %601 = vmatpush.msra.mxu0 0.0
    %602 = vmatpush.msra.mxu0 0.0
    %603 = vmatpush.msra.mxu0 0.0
    %604 = vmatpush.msra.mxu0 %v590
    %605 = vmatpush.msra.mxu0 %v589
    %606 = vmatpush.msra.mxu0 %v588
    %607 = vmatpush.msra.mxu0 %v587
    %608 = vmatmul.f32.gmra.mxu0 %v345
    %v609 = vpop.f32.mrf.mxu0
    %v610 = vadd.f32 0.0, %v609
    %611 = vmatmul.f32.gmra.mxu0 %v348
    %v612 = vpop.f32.mrf.mxu0
    %v613 = vadd.f32 0.0, %v612
    %614 = vmatmul.f32.gmra.mxu0 %v351
    %v615 = vpop.f32.mrf.mxu0
    %v616 = vadd.f32 0.0, %v615
    %617 = vmatmul.f32.gmra.mxu0 %v354
    %v618 = vpop.f32.mrf.mxu0
    %v619 = vadd.f32 0.0, %v618
    %620 = vdwg.mxu0
    %621 = vmatpush.msra.mxu0 0.0
    %622 = vmatpush.msra.mxu0 0.0
    %623 = vmatpush.msra.mxu0 0.0
    %624 = vmatpush.msra.mxu0 0.0
    %625 = vmatpush.msra.mxu0 0.0
    %626 = vmatpush.msra.mxu0 0.0
    %627 = vmatpush.msra.mxu0 0.0
    %628 = vmatpush.msra.mxu0 0.0
    %629 = vmatpush.msra.mxu0 0.0
    %630 = vmatpush.msra.mxu0 0.0
    %631 = vmatpush.msra.mxu0 0.0
    %632 = vmatpush.msra.mxu0 0.0
    %633 = vmatpush.msra.mxu0 %v590
    %634 = vmatpush.msra.mxu0 %v589
    %635 = vmatpush.msra.mxu0 %v588
    %636 = vmatpush.msra.mxu0 %v587
    %637 = vmatmul.f32.gmra.mxu0 %v386
    %v638 = vpop.f32.mrf.mxu0
    %v639 = vadd.f32 0.0, %v638
    %640 = vmatmul.f32.gmra.mxu0 %v389
    %v641 = vpop.f32.mrf.mxu0
    %v642 = vadd.f32 0.0, %v641
    %643 = vmatmul.f32.gmra.mxu0 %v392
    %v644 = vpop.f32.mrf.mxu0
    %v645 = vadd.f32 0.0, %v644
    %646 = vmatmul.f32.gmra.mxu0 %v395
    %v647 = vpop.f32.mrf.mxu0
    %v648 = vadd.f32 0.0, %v647
    %649 = vdwg.mxu0
    %v650 = vld [vmem:[#allocation8] sm:$0xff]
    %v651 = vld [vmem:[#allocation8 + $0x8] sm:$0xff]
    %v652 = vld [vmem:[#allocation8 + $0x10] sm:$0xff]
    %v653 = vld [vmem:[#allocation8 + $0x18] sm:$0xff]
    %v654 = vld [vmem:[#allocation8 + $0x20] sm:$0xff]
    %v655 = vld [vmem:[#allocation8 + $0x28] sm:$0xff]
    %v656 = vld [vmem:[#allocation8 + $0x30] sm:$0xff]
    %v657 = vld [vmem:[#allocation8 + $0x38] sm:$0xff]
    %v658 = vld [vmem:[#allocation8 + $0x40] sm:$0xff]
    %v659 = vld [vmem:[#allocation8 + $0x48] sm:$0xff]
    %v660 = vld [vmem:[#allocation8 + $0x50] sm:$0xff]
    %v661 = vld [vmem:[#allocation8 + $0x58] sm:$0xff]
    %v662 = vld [vmem:[#allocation8 + $0x60] sm:$0xff]
    %v663 = vld [vmem:[#allocation8 + $0x68] sm:$0xff]
    %v664 = vld [vmem:[#allocation8 + $0x70] sm:$0xff]
    %v665 = vld [vmem:[#allocation8 + $0x78] sm:$0xff]
    %s666 = scalar_lea.vmem [#allocation8], 128
    %v667 = vld [vmem:[%s666] sm:$0xff]
    %v668 = vld [vmem:[%s666 + $0x8] sm:$0xff]
    %v669 = vld [vmem:[%s666 + $0x10] sm:$0xff]
    %v670 = vld [vmem:[%s666 + $0x18] sm:$0xff]
    %v671 = vld [vmem:[%s666 + $0x20] sm:$0xff]
    %v672 = vld [vmem:[%s666 + $0x28] sm:$0xff]
    %v673 = vld [vmem:[%s666 + $0x30] sm:$0xff]
    %v674 = vld [vmem:[%s666 + $0x38] sm:$0xff]
    %v675 = vld [vmem:[%s666 + $0x40] sm:$0xff]
    %v676 = vld [vmem:[%s666 + $0x48] sm:$0xff]
    %v677 = vld [vmem:[%s666 + $0x50] sm:$0xff]
    %v678 = vld [vmem:[%s666 + $0x58] sm:$0xff]
    %v679 = vld [vmem:[%s666 + $0x60] sm:$0xff]
    %v680 = vld [vmem:[%s666 + $0x68] sm:$0xff]
    %v681 = vld [vmem:[%s666 + $0x70] sm:$0xff]
    %v682 = vld [vmem:[%s666 + $0x78] sm:$0xff]
    %683 = vmatpush.msra.mxu0 %v682
    %684 = vmatpush.msra.mxu0 %v681
    %685 = vmatpush.msra.mxu0 %v680
    %686 = vmatpush.msra.mxu0 %v679
    %687 = vmatpush.msra.mxu0 %v678
    %688 = vmatpush.msra.mxu0 %v677
    %689 = vmatpush.msra.mxu0 %v676
    %690 = vmatpush.msra.mxu0 %v675
    %691 = vmatpush.msra.mxu0 %v674
    %692 = vmatpush.msra.mxu0 %v673
    %693 = vmatpush.msra.mxu0 %v672
    %694 = vmatpush.msra.mxu0 %v671
    %695 = vmatpush.msra.mxu0 %v670
    %696 = vmatpush.msra.mxu0 %v669
    %697 = vmatpush.msra.mxu0 %v668
    %698 = vmatpush.msra.mxu0 %v667
    %699 = vmatmul.f32.gmra.mxu0 %v587
    %v700 = vpop.f32.mrf.mxu0
    %v701 = vadd.f32 0.0, %v700
    %702 = vmatmul.f32.gmra.mxu0 %v588
    %v703 = vpop.f32.mrf.mxu0
    %v704 = vadd.f32 0.0, %v703
    %705 = vmatmul.f32.gmra.mxu0 %v589
    %v706 = vpop.f32.mrf.mxu0
    %v707 = vadd.f32 0.0, %v706
    %708 = vmatmul.f32.gmra.mxu0 %v590
    %v709 = vpop.f32.mrf.mxu0
    %v710 = vadd.f32 0.0, %v709
    %711 = vdwg.mxu0
    %712 = vmatpush.msra.mxu0 %v665
    %713 = vmatpush.msra.mxu0 %v664
    %714 = vmatpush.msra.mxu0 %v663
    %715 = vmatpush.msra.mxu0 %v662
    %716 = vmatpush.msra.mxu0 %v661
    %717 = vmatpush.msra.mxu0 %v660
    %718 = vmatpush.msra.mxu0 %v659
    %719 = vmatpush.msra.mxu0 %v658
    %720 = vmatpush.msra.mxu0 %v657
    %721 = vmatpush.msra.mxu0 %v656
    %722 = vmatpush.msra.mxu0 %v655
    %723 = vmatpush.msra.mxu0 %v654
    %724 = vmatpush.msra.mxu0 %v653
    %725 = vmatpush.msra.mxu0 %v652
    %726 = vmatpush.msra.mxu0 %v651
    %727 = vmatpush.msra.mxu0 %v650
    %728 = vmatmul.f32.gmra.mxu0 %v610
    %v729 = vpop.f32.mrf.mxu0
    %v730 = vadd.f32 %v701, %v729
    %731 = vmatmul.f32.gmra.mxu0 %v613
    %v732 = vpop.f32.mrf.mxu0
    %v733 = vadd.f32 %v704, %v732
    %734 = vmatmul.f32.gmra.mxu0 %v616
    %v735 = vpop.f32.mrf.mxu0
    %v736 = vadd.f32 %v707, %v735
    %737 = vmatmul.f32.gmra.mxu0 %v619
    %v738 = vpop.f32.mrf.mxu0
    %v739 = vadd.f32 %v710, %v738
    %740 = vdwg.mxu0
    %s741 = scalar_lea.vmem [#allocation8], 256
    %v742 = vld [vmem:[%s741] sm:$0xff]
    %v743 = vld [vmem:[%s741 + $0x8] sm:$0xff]
    %v744 = vld [vmem:[%s741 + $0x10] sm:$0xff]
    %v745 = vld [vmem:[%s741 + $0x18] sm:$0xff]
    %v746 = vld [vmem:[%s741 + $0x20] sm:$0xff]
    %v747 = vld [vmem:[%s741 + $0x28] sm:$0xff]
    %v748 = vld [vmem:[%s741 + $0x30] sm:$0xff]
    %v749 = vld [vmem:[%s741 + $0x38] sm:$0xff]
    %v750 = vld [vmem:[%s741 + $0x40] sm:$0xff]
    %v751 = vld [vmem:[%s741 + $0x48] sm:$0xff]
    %v752 = vld [vmem:[%s741 + $0x50] sm:$0xff]
    %v753 = vld [vmem:[%s741 + $0x58] sm:$0xff]
    %v754 = vld [vmem:[%s741 + $0x60] sm:$0xff]
    %v755 = vld [vmem:[%s741 + $0x68] sm:$0xff]
    %v756 = vld [vmem:[%s741 + $0x70] sm:$0xff]
    %v757 = vld [vmem:[%s741 + $0x78] sm:$0xff]
    %758 = vmatpush.msra.mxu0 %v757
    %759 = vmatpush.msra.mxu0 %v756
    %760 = vmatpush.msra.mxu0 %v755
    %761 = vmatpush.msra.mxu0 %v754
    %762 = vmatpush.msra.mxu0 %v753
    %763 = vmatpush.msra.mxu0 %v752
    %764 = vmatpush.msra.mxu0 %v751
    %765 = vmatpush.msra.mxu0 %v750
    %766 = vmatpush.msra.mxu0 %v749
    %767 = vmatpush.msra.mxu0 %v748
    %768 = vmatpush.msra.mxu0 %v747
    %769 = vmatpush.msra.mxu0 %v746
    %770 = vmatpush.msra.mxu0 %v745
    %771 = vmatpush.msra.mxu0 %v744
    %772 = vmatpush.msra.mxu0 %v743
    %773 = vmatpush.msra.mxu0 %v742
    %774 = vmatmul.f32.gmra.mxu0 %v639
    %v775 = vpop.f32.mrf.mxu0
    %v776 = vadd.f32 0.0, %v775
    %777 = vmatmul.f32.gmra.mxu0 %v642
    %v778 = vpop.f32.mrf.mxu0
    %v779 = vadd.f32 0.0, %v778
    %780 = vmatmul.f32.gmra.mxu0 %v645
    %v781 = vpop.f32.mrf.mxu0
    %v782 = vadd.f32 0.0, %v781
    %783 = vmatmul.f32.gmra.mxu0 %v648
    %v784 = vpop.f32.mrf.mxu0
    %v785 = vadd.f32 0.0, %v784
    %786 = vdwg.mxu0
    %v787 = vadd.f32 %v730, %v776
    %v788 = vadd.f32 %v733, %v779
    %v789 = vadd.f32 %v736, %v782
    %v790 = vadd.f32 %v739, %v785
    %v792 = vperm.slane %v591, 0
    %v794 = vadd.f32 %v787, %v792
    %v795 = vadd.f32 %v788, %v792
    %v796 = vadd.f32 %v789, %v792
    %v797 = vadd.f32 %v790, %v792
    %v798 = vmax.f32 %v794, 0.0
    %v799 = vmax.f32 %v795, 0.0
    %v800 = vmax.f32 %v796, 0.0
    %v801 = vmax.f32 %v797, 0.0
    %v802 = vld [vmem:[#allocation11] sm:$0xff]
    %v803 = vld [vmem:[#allocation11 + $0x8] sm:$0xff]
    %v804 = vld [vmem:[#allocation13] sm:$0xff]
    %v805 = vld [vmem:[#allocation13 + $0x8] sm:$0xff]
    %v806 = vld [vmem:[#allocation13 + $0x10] sm:$0xff]
    %v807 = vld [vmem:[#allocation13 + $0x18] sm:$0xff]
    %v808 = vld [vmem:[#allocation13 + $0x20] sm:$0xff]
    %v809 = vld [vmem:[#allocation13 + $0x28] sm:$0xff]
    %v810 = vld [vmem:[#allocation13 + $0x30] sm:$0xff]
    %v811 = vld [vmem:[#allocation13 + $0x38] sm:$0xff]
    %v812 = vld [vmem:[#allocation13 + $0x40] sm:$0xff]
    %v813 = vld [vmem:[#allocation13 + $0x48] sm:$0xff]
    %v814 = vld [vmem:[#allocation13 + $0x50] sm:$0xff]
    %v815 = vld [vmem:[#allocation13 + $0x58] sm:$0xff]
    %v816 = vld [vmem:[#allocation13 + $0x60] sm:$0xff]
    %v817 = vld [vmem:[#allocation13 + $0x68] sm:$0xff]
    %v818 = vld [vmem:[#allocation13 + $0x70] sm:$0xff]
    %v819 = vld [vmem:[#allocation13 + $0x78] sm:$0xff]
    %v820 = vld [vmem:[#allocation14] sm:$0xff]
    %v821 = vld [vmem:[#allocation14 + $0x8] sm:$0xff]
    %v822 = vld [vmem:[#allocation14 + $0x10] sm:$0xff]
    %v823 = vld [vmem:[#allocation14 + $0x18] sm:$0xff]
    %v824 = vld [vmem:[#allocation14 + $0x20] sm:$0xff]
    %v825 = vld [vmem:[#allocation14 + $0x28] sm:$0xff]
    %v826 = vld [vmem:[#allocation14 + $0x30] sm:$0xff]
    %v827 = vld [vmem:[#allocation14 + $0x38] sm:$0xff]
    %v828 = vld [vmem:[#allocation14 + $0x40] sm:$0xff]
    %v829 = vld [vmem:[#allocation14 + $0x48] sm:$0xff]
    %v830 = vld [vmem:[#allocation14 + $0x50] sm:$0xff]
    %v831 = vld [vmem:[#allocation14 + $0x58] sm:$0xff]
    %v832 = vld [vmem:[#allocation14 + $0x60] sm:$0xff]
    %v833 = vld [vmem:[#allocation14 + $0x68] sm:$0xff]
    %v834 = vld [vmem:[#allocation14 + $0x70] sm:$0xff]
    %v835 = vld [vmem:[#allocation14 + $0x78] sm:$0xff]
    %836 = vmatpush.msra.mxu0 0.0
    %837 = vmatpush.msra.mxu0 0.0
    %838 = vmatpush.msra.mxu0 0.0
    %839 = vmatpush.msra.mxu0 0.0
    %840 = vmatpush.msra.mxu0 0.0
    %841 = vmatpush.msra.mxu0 0.0
    %842 = vmatpush.msra.mxu0 0.0
    %843 = vmatpush.msra.mxu0 0.0
    %844 = vmatpush.msra.mxu0 0.0
    %845 = vmatpush.msra.mxu0 0.0
    %846 = vmatpush.msra.mxu0 0.0
    %847 = vmatpush.msra.mxu0 0.0
    %848 = vmatpush.msra.mxu0 %v801
    %849 = vmatpush.msra.mxu0 %v800
    %850 = vmatpush.msra.mxu0 %v799
    %851 = vmatpush.msra.mxu0 %v798
    %852 = vmatmul.f32.gmra.mxu0 %v386
    %v853 = vpop.f32.mrf.mxu0
    %v854 = vadd.f32 0.0, %v853
    %855 = vmatmul.f32.gmra.mxu0 %v389
    %v856 = vpop.f32.mrf.mxu0
    %v857 = vadd.f32 0.0, %v856
    %858 = vmatmul.f32.gmra.mxu0 %v392
    %v859 = vpop.f32.mrf.mxu0
    %v860 = vadd.f32 0.0, %v859
    %861 = vmatmul.f32.gmra.mxu0 %v395
    %v862 = vpop.f32.mrf.mxu0
    %v863 = vadd.f32 0.0, %v862
    %864 = vdwg.mxu0
    %v865 = vmax.f32 %v798, %v854
    %v866 = vmax.f32 %v799, %v857
    %v867 = vmax.f32 %v800, %v860
    %v868 = vmax.f32 %v801, %v863
    %v870 = vsel %vm343, %v802, 0
    %v873 = vsel %vm343, %v803, 0
    %875 = vmatpush.msra.mxu0 0.0
    %876 = vmatpush.msra.mxu0 0.0
    %877 = vmatpush.msra.mxu0 0.0
    %878 = vmatpush.msra.mxu0 0.0
    %879 = vmatpush.msra.mxu0 0.0
    %880 = vmatpush.msra.mxu0 0.0
    %881 = vmatpush.msra.mxu0 0.0
    %882 = vmatpush.msra.mxu0 0.0
    %883 = vmatpush.msra.mxu0 0.0
    %884 = vmatpush.msra.mxu0 0.0
    %885 = vmatpush.msra.mxu0 0.0
    %886 = vmatpush.msra.mxu0 0.0
    %887 = vmatpush.msra.mxu0 %v868
    %888 = vmatpush.msra.mxu0 %v867
    %889 = vmatpush.msra.mxu0 %v866
    %890 = vmatpush.msra.mxu0 %v865
    %891 = vmatmul.f32.gmra.mxu0 %v870
    %v892 = vpop.f32.mrf.mxu0
    %v893 = vadd.f32 0.0, %v892
    %894 = vmatmul.f32.gmra.mxu0 %v873
    %v895 = vpop.f32.mrf.mxu0
    %v896 = vadd.f32 0.0, %v895
    %897 = vdwg.mxu0
    %898 = vmatpush.msra.mxu0 %v819
    %899 = vmatpush.msra.mxu0 %v818
    %900 = vmatpush.msra.mxu0 %v817
    %901 = vmatpush.msra.mxu0 %v816
    %902 = vmatpush.msra.mxu0 %v815
    %903 = vmatpush.msra.mxu0 %v814
    %904 = vmatpush.msra.mxu0 %v813
    %905 = vmatpush.msra.mxu0 %v812
    %906 = vmatpush.msra.mxu0 %v811
    %907 = vmatpush.msra.mxu0 %v810
    %908 = vmatpush.msra.mxu0 %v809
    %909 = vmatpush.msra.mxu0 %v808
    %910 = vmatpush.msra.mxu0 %v807
    %911 = vmatpush.msra.mxu0 %v806
    %912 = vmatpush.msra.mxu0 %v805
    %913 = vmatpush.msra.mxu0 %v804
    %914 = vmatmul.f32.gmra.mxu0 %v893
    %v915 = vpop.f32.mrf.mxu0
    %v916 = vadd.f32 0.0, %v915
    %917 = vmatmul.f32.gmra.mxu0 %v896
    %v918 = vpop.f32.mrf.mxu0
    %v919 = vadd.f32 0.0, %v918
    %920 = vdwg.mxu0
    %v921 = vmax.f32 %v893, %v916
    %v922 = vmax.f32 %v896, %v919
    %923 = vmatpush.msra.mxu0 %v835
    %924 = vmatpush.msra.mxu0 %v834
    %925 = vmatpush.msra.mxu0 %v833
    %926 = vmatpush.msra.mxu0 %v832
    %927 = vmatpush.msra.mxu0 %v831
    %928 = vmatpush.msra.mxu0 %v830
    %929 = vmatpush.msra.mxu0 %v829
    %930 = vmatpush.msra.mxu0 %v828
    %931 = vmatpush.msra.mxu0 %v827
    %932 = vmatpush.msra.mxu0 %v826
    %933 = vmatpush.msra.mxu0 %v825
    %934 = vmatpush.msra.mxu0 %v824
    %935 = vmatpush.msra.mxu0 %v823
    %936 = vmatpush.msra.mxu0 %v822
    %937 = vmatpush.msra.mxu0 %v821
    %938 = vmatpush.msra.mxu0 %v820
    %939 = vmatmul.f32.gmra.mxu0 %v921
    %v940 = vpop.f32.mrf.mxu0
    %v941 = vadd.f32 0.0, %v940
    %942 = vmatmul.f32.gmra.mxu0 %v922
    %v943 = vpop.f32.mrf.mxu0
    %v944 = vadd.f32 0.0, %v943
    %945 = vdwg.mxu0
    %v946 = vld [vmem:[#allocation16] sm:$0xff]
    %v947 = vld [vmem:[#allocation16 + $0x8] sm:$0xff]
    %v948 = vld [vmem:[#allocation17] sm:$0xff]
    %v949 = vld [vmem:[#allocation17 + $0x8] sm:$0xff]
    %v950 = vld [vmem:[#allocation20] sm:$0x1]
    %vm951 = vcmask 130048
    %v953 = vsel %vm951, %v946, 0
    %v956 = vsel %vm951, %v947, 0
    %958 = vmatpush.msra.mxu0 0.0
    %959 = vmatpush.msra.mxu0 0.0
    %960 = vmatpush.msra.mxu0 0.0
    %961 = vmatpush.msra.mxu0 0.0
    %962 = vmatpush.msra.mxu0 0.0
    %963 = vmatpush.msra.mxu0 0.0
    %964 = vmatpush.msra.mxu0 0.0
    %965 = vmatpush.msra.mxu0 0.0
    %966 = vmatpush.msra.mxu0 0.0
    %967 = vmatpush.msra.mxu0 0.0
    %968 = vmatpush.msra.mxu0 0.0
    %969 = vmatpush.msra.mxu0 0.0
    %970 = vmatpush.msra.mxu0 0.0
    %971 = vmatpush.msra.mxu0 0.0
    %972 = vmatpush.msra.mxu0 %v944
    %973 = vmatpush.msra.mxu0 %v941
    %974 = vmatmul.f32.gmra.mxu0 %v953
    %v975 = vpop.f32.mrf.mxu0
    %v976 = vadd.f32 0.0, %v975
    %977 = vmatmul.f32.gmra.mxu0 %v956
    %v978 = vpop.f32.mrf.mxu0
    %v979 = vadd.f32 0.0, %v978
    %980 = vdwg.mxu0
    %v982 = vsel %vm951, %v948, 0
    %v985 = vsel %vm951, %v949, 0
    %987 = vmatpush.msra.mxu0 0.0
    %988 = vmatpush.msra.mxu0 0.0
    %989 = vmatpush.msra.mxu0 0.0
    %990 = vmatpush.msra.mxu0 0.0
    %991 = vmatpush.msra.mxu0 0.0
    %992 = vmatpush.msra.mxu0 0.0
    %993 = vmatpush.msra.mxu0 0.0
    %994 = vmatpush.msra.mxu0 0.0
    %995 = vmatpush.msra.mxu0 0.0
    %996 = vmatpush.msra.mxu0 0.0
    %997 = vmatpush.msra.mxu0 0.0
    %998 = vmatpush.msra.mxu0 0.0
    %999 = vmatpush.msra.mxu0 0.0
    %1000 = vmatpush.msra.mxu0 0.0
    %1001 = vmatpush.msra.mxu0 %v944
    %1002 = vmatpush.msra.mxu0 %v941
    %1003 = vmatmul.f32.gmra.mxu0 %v982
    %v1004 = vpop.f32.mrf.mxu0
    %v1005 = vadd.f32 0.0, %v1004
    %1006 = vmatmul.f32.gmra.mxu0 %v985
    %v1007 = vpop.f32.mrf.mxu0
    %v1008 = vadd.f32 0.0, %v1007
    %1009 = vdwg.mxu0
    %v1010 = vld [vmem:[#allocation19] sm:$0xff]
    %v1011 = vld [vmem:[#allocation19 + $0x8] sm:$0xff]
    %v1012 = vld [vmem:[#allocation19 + $0x10] sm:$0xff]
    %v1013 = vld [vmem:[#allocation19 + $0x18] sm:$0xff]
    %v1014 = vld [vmem:[#allocation19 + $0x20] sm:$0xff]
    %v1015 = vld [vmem:[#allocation19 + $0x28] sm:$0xff]
    %v1016 = vld [vmem:[#allocation19 + $0x30] sm:$0xff]
    %v1017 = vld [vmem:[#allocation19 + $0x38] sm:$0xff]
    %s1018 = scalar_lea.vmem [#allocation19], 64
    %v1019 = vld [vmem:[%s1018] sm:$0xff]
    %v1020 = vld [vmem:[%s1018 + $0x8] sm:$0xff]
    %v1021 = vld [vmem:[%s1018 + $0x10] sm:$0xff]
    %v1022 = vld [vmem:[%s1018 + $0x18] sm:$0xff]
    %v1023 = vld [vmem:[%s1018 + $0x20] sm:$0xff]
    %v1024 = vld [vmem:[%s1018 + $0x28] sm:$0xff]
    %v1025 = vld [vmem:[%s1018 + $0x30] sm:$0xff]
    %v1026 = vld [vmem:[%s1018 + $0x38] sm:$0xff]
    %v1028 = vsel %vm443, %v941, 0
    %v1031 = vsel %vm443, %v944, 0
    %1033 = vmatpush.msra.mxu0 0.0
    %1034 = vmatpush.msra.mxu0 0.0
    %1035 = vmatpush.msra.mxu0 0.0
    %1036 = vmatpush.msra.mxu0 0.0
    %1037 = vmatpush.msra.mxu0 0.0
    %1038 = vmatpush.msra.mxu0 0.0
    %1039 = vmatpush.msra.mxu0 0.0
    %1040 = vmatpush.msra.mxu0 0.0
    %1041 = vmatpush.msra.mxu0 %v1026
    %1042 = vmatpush.msra.mxu0 %v1025
    %1043 = vmatpush.msra.mxu0 %v1024
    %1044 = vmatpush.msra.mxu0 %v1023
    %1045 = vmatpush.msra.mxu0 %v1022
    %1046 = vmatpush.msra.mxu0 %v1021
    %1047 = vmatpush.msra.mxu0 %v1020
    %1048 = vmatpush.msra.mxu0 %v1019
    %1049 = vmatmul.f32.gmra.mxu0 %v1028
    %v1050 = vpop.f32.mrf.mxu0
    %v1051 = vadd.f32 0.0, %v1050
    %1052 = vmatmul.f32.gmra.mxu0 %v1031
    %v1053 = vpop.f32.mrf.mxu0
    %v1054 = vadd.f32 0.0, %v1053
    %1055 = vdwg.mxu0
    %v1057 = vsel %vm443, %v976, 0
    %v1060 = vsel %vm443, %v979, 0
    %1062 = vmatpush.msra.mxu0 0.0
    %1063 = vmatpush.msra.mxu0 0.0
    %1064 = vmatpush.msra.mxu0 0.0
    %1065 = vmatpush.msra.mxu0 0.0
    %1066 = vmatpush.msra.mxu0 0.0
    %1067 = vmatpush.msra.mxu0 0.0
    %1068 = vmatpush.msra.mxu0 0.0
    %1069 = vmatpush.msra.mxu0 0.0
    %1070 = vmatpush.msra.mxu0 %v1017
    %1071 = vmatpush.msra.mxu0 %v1016
    %1072 = vmatpush.msra.mxu0 %v1015
    %1073 = vmatpush.msra.mxu0 %v1014
    %1074 = vmatpush.msra.mxu0 %v1013
    %1075 = vmatpush.msra.mxu0 %v1012
    %1076 = vmatpush.msra.mxu0 %v1011
    %1077 = vmatpush.msra.mxu0 %v1010
    %1078 = vmatmul.f32.gmra.mxu0 %v1057
    %v1079 = vpop.f32.mrf.mxu0
    %v1080 = vadd.f32 %v1051, %v1079
    %1081 = vmatmul.f32.gmra.mxu0 %v1060
    %v1082 = vpop.f32.mrf.mxu0
    %v1083 = vadd.f32 %v1054, %v1082
    %1084 = vdwg.mxu0
    %s1085 = scalar_lea.vmem [#allocation19], 128
    %v1086 = vld [vmem:[%s1085] sm:$0xff]
    %v1087 = vld [vmem:[%s1085 + $0x8] sm:$0xff]
    %v1088 = vld [vmem:[%s1085 + $0x10] sm:$0xff]
    %v1089 = vld [vmem:[%s1085 + $0x18] sm:$0xff]
    %v1090 = vld [vmem:[%s1085 + $0x20] sm:$0xff]
    %v1091 = vld [vmem:[%s1085 + $0x28] sm:$0xff]
    %v1092 = vld [vmem:[%s1085 + $0x30] sm:$0xff]
    %v1093 = vld [vmem:[%s1085 + $0x38] sm:$0xff]
    %v1095 = vsel %vm443, %v1005, 0
    %v1098 = vsel %vm443, %v1008, 0
    %1100 = vmatpush.msra.mxu0 0.0
    %1101 = vmatpush.msra.mxu0 0.0
    %1102 = vmatpush.msra.mxu0 0.0
    %1103 = vmatpush.msra.mxu0 0.0
    %1104 = vmatpush.msra.mxu0 0.0
    %1105 = vmatpush.msra.mxu0 0.0
    %1106 = vmatpush.msra.mxu0 0.0
    %1107 = vmatpush.msra.mxu0 0.0
    %1108 = vmatpush.msra.mxu0 %v1093
    %1109 = vmatpush.msra.mxu0 %v1092
    %1110 = vmatpush.msra.mxu0 %v1091
    %1111 = vmatpush.msra.mxu0 %v1090
    %1112 = vmatpush.msra.mxu0 %v1089
    %1113 = vmatpush.msra.mxu0 %v1088
    %1114 = vmatpush.msra.mxu0 %v1087
    %1115 = vmatpush.msra.mxu0 %v1086
    %1116 = vmatmul.f32.gmra.mxu0 %v1095
    %v1117 = vpop.f32.mrf.mxu0
    %v1118 = vadd.f32 0.0, %v1117
    %1119 = vmatmul.f32.gmra.mxu0 %v1098
    %v1120 = vpop.f32.mrf.mxu0
    %v1121 = vadd.f32 0.0, %v1120
    %1122 = vdwg.mxu0
    %v1123 = vadd.f32 %v1080, %v1118
    %v1124 = vadd.f32 %v1083, %v1121
    %v1126 = vperm.slane %v950, 0
    %v1128 = vadd.f32 %v1123, %v1126
    %v1129 = vadd.f32 %v1124, %v1126
    %v1130 = vmax.f32 %v1128, 0.0
    %v1131 = vmax.f32 %v1129, 0.0
    %v1132 = vld [vmem:[#allocation22] sm:$0x1]
    %1133 = vmatpush.msra.mxu0 0.0
    %1134 = vmatpush.msra.mxu0 0.0
    %1135 = vmatpush.msra.mxu0 0.0
    %1136 = vmatpush.msra.mxu0 0.0
    %1137 = vmatpush.msra.mxu0 0.0
    %1138 = vmatpush.msra.mxu0 0.0
    %1139 = vmatpush.msra.mxu0 0.0
    %1140 = vmatpush.msra.mxu0 0.0
    %1141 = vmatpush.msra.mxu0 0.0
    %1142 = vmatpush.msra.mxu0 0.0
    %1143 = vmatpush.msra.mxu0 0.0
    %1144 = vmatpush.msra.mxu0 0.0
    %1145 = vmatpush.msra.mxu0 0.0
    %1146 = vmatpush.msra.mxu0 0.0
    %1147 = vmatpush.msra.mxu0 %v1131
    %1148 = vmatpush.msra.mxu0 %v1130
    %1149 = vmatmul.f32.gmra.mxu0 %v953
    %v1150 = vpop.f32.mrf.mxu0
    %v1151 = vadd.f32 0.0, %v1150
    %1152 = vmatmul.f32.gmra.mxu0 %v956
    %v1153 = vpop.f32.mrf.mxu0
    %v1154 = vadd.f32 0.0, %v1153
    %1155 = vdwg.mxu0
    %1156 = vmatpush.msra.mxu0 0.0
    %1157 = vmatpush.msra.mxu0 0.0
    %1158 = vmatpush.msra.mxu0 0.0
    %1159 = vmatpush.msra.mxu0 0.0
    %1160 = vmatpush.msra.mxu0 0.0
    %1161 = vmatpush.msra.mxu0 0.0
    %1162 = vmatpush.msra.mxu0 0.0
    %1163 = vmatpush.msra.mxu0 0.0
    %1164 = vmatpush.msra.mxu0 0.0
    %1165 = vmatpush.msra.mxu0 0.0
    %1166 = vmatpush.msra.mxu0 0.0
    %1167 = vmatpush.msra.mxu0 0.0
    %1168 = vmatpush.msra.mxu0 0.0
    %1169 = vmatpush.msra.mxu0 0.0
    %1170 = vmatpush.msra.mxu0 %v1131
    %1171 = vmatpush.msra.mxu0 %v1130
    %1172 = vmatmul.f32.gmra.mxu0 %v982
    %v1173 = vpop.f32.mrf.mxu0
    %v1174 = vadd.f32 0.0, %v1173
    %1175 = vmatmul.f32.gmra.mxu0 %v985
    %v1176 = vpop.f32.mrf.mxu0
    %v1177 = vadd.f32 0.0, %v1176
    %1178 = vdwg.mxu0
    %v1179 = vld [vmem:[%s14] sm:$0xff]
    %v1180 = vld [vmem:[%s14 + $0x8] sm:$0xff]
    %v1181 = vld [vmem:[%s14 + $0x10] sm:$0xff]
    %v1182 = vld [vmem:[%s14 + $0x18] sm:$0xff]
    %v1183 = vld [vmem:[%s14 + $0x20] sm:$0xff]
    %v1184 = vld [vmem:[%s14 + $0x28] sm:$0xff]
    %v1185 = vld [vmem:[%s14 + $0x30] sm:$0xff]
    %v1186 = vld [vmem:[%s14 + $0x38] sm:$0xff]
    %v1187 = vld [vmem:[%s14 + $0x40] sm:$0xff]
    %v1188 = vld [vmem:[%s14 + $0x48] sm:$0xff]
    %v1189 = vld [vmem:[%s14 + $0x50] sm:$0xff]
    %v1190 = vld [vmem:[%s14 + $0x58] sm:$0xff]
    %v1191 = vld [vmem:[%s14 + $0x60] sm:$0xff]
    %v1192 = vld [vmem:[%s14 + $0x68] sm:$0xff]
    %v1193 = vld [vmem:[%s14 + $0x70] sm:$0xff]
    %v1194 = vld [vmem:[%s14 + $0x78] sm:$0xff]
    %s1195 = scalar_lea.vmem %s14, 128
    %v1196 = vld [vmem:[%s1195] sm:$0xff]
    %v1197 = vld [vmem:[%s1195 + $0x8] sm:$0xff]
    %v1198 = vld [vmem:[%s1195 + $0x10] sm:$0xff]
    %v1199 = vld [vmem:[%s1195 + $0x18] sm:$0xff]
    %v1200 = vld [vmem:[%s1195 + $0x20] sm:$0xff]
    %v1201 = vld [vmem:[%s1195 + $0x28] sm:$0xff]
    %v1202 = vld [vmem:[%s1195 + $0x30] sm:$0xff]
    %v1203 = vld [vmem:[%s1195 + $0x38] sm:$0xff]
    %v1204 = vld [vmem:[%s1195 + $0x40] sm:$0xff]
    %v1205 = vld [vmem:[%s1195 + $0x48] sm:$0xff]
    %v1206 = vld [vmem:[%s1195 + $0x50] sm:$0xff]
    %v1207 = vld [vmem:[%s1195 + $0x58] sm:$0xff]
    %v1208 = vld [vmem:[%s1195 + $0x60] sm:$0xff]
    %v1209 = vld [vmem:[%s1195 + $0x68] sm:$0xff]
    %v1210 = vld [vmem:[%s1195 + $0x70] sm:$0xff]
    %v1211 = vld [vmem:[%s1195 + $0x78] sm:$0xff]
    %1212 = vmatpush.msra.mxu0 %v1211
    %1213 = vmatpush.msra.mxu0 %v1210
    %1214 = vmatpush.msra.mxu0 %v1209
    %1215 = vmatpush.msra.mxu0 %v1208
    %1216 = vmatpush.msra.mxu0 %v1207
    %1217 = vmatpush.msra.mxu0 %v1206
    %1218 = vmatpush.msra.mxu0 %v1205
    %1219 = vmatpush.msra.mxu0 %v1204
    %1220 = vmatpush.msra.mxu0 %v1203
    %1221 = vmatpush.msra.mxu0 %v1202
    %1222 = vmatpush.msra.mxu0 %v1201
    %1223 = vmatpush.msra.mxu0 %v1200
    %1224 = vmatpush.msra.mxu0 %v1199
    %1225 = vmatpush.msra.mxu0 %v1198
    %1226 = vmatpush.msra.mxu0 %v1197
    %1227 = vmatpush.msra.mxu0 %v1196
    %1228 = vmatmul.f32.gmra.mxu0 %v1130
    %v1229 = vpop.f32.mrf.mxu0
    %v1230 = vadd.f32 0.0, %v1229
    %1231 = vmatmul.f32.gmra.mxu0 %v1131
    %v1232 = vpop.f32.mrf.mxu0
    %v1233 = vadd.f32 0.0, %v1232
    %1234 = vdwg.mxu0
    %1235 = vmatpush.msra.mxu0 %v1194
    %1236 = vmatpush.msra.mxu0 %v1193
    %1237 = vmatpush.msra.mxu0 %v1192
    %1238 = vmatpush.msra.mxu0 %v1191
    %1239 = vmatpush.msra.mxu0 %v1190
    %1240 = vmatpush.msra.mxu0 %v1189
    %1241 = vmatpush.msra.mxu0 %v1188
    %1242 = vmatpush.msra.mxu0 %v1187
    %1243 = vmatpush.msra.mxu0 %v1186
    %1244 = vmatpush.msra.mxu0 %v1185
    %1245 = vmatpush.msra.mxu0 %v1184
    %1246 = vmatpush.msra.mxu0 %v1183
    %1247 = vmatpush.msra.mxu0 %v1182
    %1248 = vmatpush.msra.mxu0 %v1181
    %1249 = vmatpush.msra.mxu0 %v1180
    %1250 = vmatpush.msra.mxu0 %v1179
    %1251 = vmatmul.f32.gmra.mxu0 %v1151
    %v1252 = vpop.f32.mrf.mxu0
    %v1253 = vadd.f32 %v1230, %v1252
    %1254 = vmatmul.f32.gmra.mxu0 %v1154
    %v1255 = vpop.f32.mrf.mxu0
    %v1256 = vadd.f32 %v1233, %v1255
    %1257 = vdwg.mxu0
    %s1258 = scalar_lea.vmem %s14, 256
    %v1259 = vld [vmem:[%s1258] sm:$0xff]
    %v1260 = vld [vmem:[%s1258 + $0x8] sm:$0xff]
    %v1261 = vld [vmem:[%s1258 + $0x10] sm:$0xff]
    %v1262 = vld [vmem:[%s1258 + $0x18] sm:$0xff]
    %v1263 = vld [vmem:[%s1258 + $0x20] sm:$0xff]
    %v1264 = vld [vmem:[%s1258 + $0x28] sm:$0xff]
    %v1265 = vld [vmem:[%s1258 + $0x30] sm:$0xff]
    %v1266 = vld [vmem:[%s1258 + $0x38] sm:$0xff]
    %v1267 = vld [vmem:[%s1258 + $0x40] sm:$0xff]
    %v1268 = vld [vmem:[%s1258 + $0x48] sm:$0xff]
    %v1269 = vld [vmem:[%s1258 + $0x50] sm:$0xff]
    %v1270 = vld [vmem:[%s1258 + $0x58] sm:$0xff]
    %v1271 = vld [vmem:[%s1258 + $0x60] sm:$0xff]
    %v1272 = vld [vmem:[%s1258 + $0x68] sm:$0xff]
    %v1273 = vld [vmem:[%s1258 + $0x70] sm:$0xff]
    %v1274 = vld [vmem:[%s1258 + $0x78] sm:$0xff]
    %1275 = vmatpush.msra.mxu0 %v1274
    %1276 = vmatpush.msra.mxu0 %v1273
    %1277 = vmatpush.msra.mxu0 %v1272
    %1278 = vmatpush.msra.mxu0 %v1271
    %1279 = vmatpush.msra.mxu0 %v1270
    %1280 = vmatpush.msra.mxu0 %v1269
    %1281 = vmatpush.msra.mxu0 %v1268
    %1282 = vmatpush.msra.mxu0 %v1267
    %1283 = vmatpush.msra.mxu0 %v1266
    %1284 = vmatpush.msra.mxu0 %v1265
    %1285 = vmatpush.msra.mxu0 %v1264
    %1286 = vmatpush.msra.mxu0 %v1263
    %1287 = vmatpush.msra.mxu0 %v1262
    %1288 = vmatpush.msra.mxu0 %v1261
    %1289 = vmatpush.msra.mxu0 %v1260
    %1290 = vmatpush.msra.mxu0 %v1259
    %1291 = vmatmul.f32.gmra.mxu0 %v1174
    %v1292 = vpop.f32.mrf.mxu0
    %v1293 = vadd.f32 0.0, %v1292
    %1294 = vmatmul.f32.gmra.mxu0 %v1177
    %v1295 = vpop.f32.mrf.mxu0
    %v1296 = vadd.f32 0.0, %v1295
    %1297 = vdwg.mxu0
    %v1298 = vadd.f32 %v1253, %v1293
    %v1299 = vadd.f32 %v1256, %v1296
    %v1301 = vperm.slane %v1132, 0
    %v1303 = vadd.f32 %v1298, %v1301
    %v1304 = vadd.f32 %v1299, %v1301
    %v1305 = vmax.f32 %v1303, 0.0
    %v1306 = vmax.f32 %v1304, 0.0
    %v1307 = vld [vmem:[#allocation23] sm:$0xff]
    %v1308 = vld [vmem:[#allocation25] sm:$0xff]
    %v1309 = vld [vmem:[#allocation25 + $0x8] sm:$0xff]
    %v1310 = vld [vmem:[#allocation25 + $0x10] sm:$0xff]
    %v1311 = vld [vmem:[#allocation25 + $0x18] sm:$0xff]
    %v1312 = vld [vmem:[#allocation25 + $0x20] sm:$0xff]
    %v1313 = vld [vmem:[#allocation25 + $0x28] sm:$0xff]
    %v1314 = vld [vmem:[#allocation25 + $0x30] sm:$0xff]
    %v1315 = vld [vmem:[#allocation25 + $0x38] sm:$0xff]
    %v1316 = vld [vmem:[#allocation25 + $0x40] sm:$0xff]
    %v1317 = vld [vmem:[#allocation25 + $0x48] sm:$0xff]
    %v1318 = vld [vmem:[#allocation25 + $0x50] sm:$0xff]
    %v1319 = vld [vmem:[#allocation25 + $0x58] sm:$0xff]
    %v1320 = vld [vmem:[#allocation25 + $0x60] sm:$0xff]
    %v1321 = vld [vmem:[#allocation25 + $0x68] sm:$0xff]
    %v1322 = vld [vmem:[#allocation25 + $0x70] sm:$0xff]
    %v1323 = vld [vmem:[#allocation25 + $0x78] sm:$0xff]
    %v1324 = vld [vmem:[%s18] sm:$0xff]
    %v1325 = vld [vmem:[%s18 + $0x8] sm:$0xff]
    %v1326 = vld [vmem:[%s18 + $0x10] sm:$0xff]
    %v1327 = vld [vmem:[%s18 + $0x18] sm:$0xff]
    %v1328 = vld [vmem:[%s18 + $0x20] sm:$0xff]
    %v1329 = vld [vmem:[%s18 + $0x28] sm:$0xff]
    %v1330 = vld [vmem:[%s18 + $0x30] sm:$0xff]
    %v1331 = vld [vmem:[%s18 + $0x38] sm:$0xff]
    %v1332 = vld [vmem:[%s18 + $0x40] sm:$0xff]
    %v1333 = vld [vmem:[%s18 + $0x48] sm:$0xff]
    %v1334 = vld [vmem:[%s18 + $0x50] sm:$0xff]
    %v1335 = vld [vmem:[%s18 + $0x58] sm:$0xff]
    %v1336 = vld [vmem:[%s18 + $0x60] sm:$0xff]
    %v1337 = vld [vmem:[%s18 + $0x68] sm:$0xff]
    %v1338 = vld [vmem:[%s18 + $0x70] sm:$0xff]
    %v1339 = vld [vmem:[%s18 + $0x78] sm:$0xff]
    %1340 = vmatpush.msra.mxu0 0.0
    %1341 = vmatpush.msra.mxu0 0.0
    %1342 = vmatpush.msra.mxu0 0.0
    %1343 = vmatpush.msra.mxu0 0.0
    %1344 = vmatpush.msra.mxu0 0.0
    %1345 = vmatpush.msra.mxu0 0.0
    %1346 = vmatpush.msra.mxu0 0.0
    %1347 = vmatpush.msra.mxu0 0.0
    %1348 = vmatpush.msra.mxu0 0.0
    %1349 = vmatpush.msra.mxu0 0.0
    %1350 = vmatpush.msra.mxu0 0.0
    %1351 = vmatpush.msra.mxu0 0.0
    %1352 = vmatpush.msra.mxu0 0.0
    %1353 = vmatpush.msra.mxu0 0.0
    %1354 = vmatpush.msra.mxu0 %v1306
    %1355 = vmatpush.msra.mxu0 %v1305
    %1356 = vmatmul.f32.gmra.mxu0 %v982
    %v1357 = vpop.f32.mrf.mxu0
    %v1358 = vadd.f32 0.0, %v1357
    %1359 = vmatmul.f32.gmra.mxu0 %v985
    %v1360 = vpop.f32.mrf.mxu0
    %v1361 = vadd.f32 0.0, %v1360
    %1362 = vdwg.mxu0
    %v1363 = vmax.f32 %v1305, %v1358
    %v1364 = vmax.f32 %v1306, %v1361
    %v1366 = vsel %vm951, %v1307, 0
    %1368 = vmatpush.msra.mxu0 0.0
    %1369 = vmatpush.msra.mxu0 0.0
    %1370 = vmatpush.msra.mxu0 0.0
    %1371 = vmatpush.msra.mxu0 0.0
    %1372 = vmatpush.msra.mxu0 0.0
    %1373 = vmatpush.msra.mxu0 0.0
    %1374 = vmatpush.msra.mxu0 0.0
    %1375 = vmatpush.msra.mxu0 0.0
    %1376 = vmatpush.msra.mxu0 0.0
    %1377 = vmatpush.msra.mxu0 0.0
    %1378 = vmatpush.msra.mxu0 0.0
    %1379 = vmatpush.msra.mxu0 0.0
    %1380 = vmatpush.msra.mxu0 0.0
    %1381 = vmatpush.msra.mxu0 0.0
    %1382 = vmatpush.msra.mxu0 %v1364
    %1383 = vmatpush.msra.mxu0 %v1363
    %1384 = vmatmul.f32.gmra.mxu0 %v1366
    %v1385 = vpop.f32.mrf.mxu0
    %v1386 = vadd.f32 0.0, %v1385
    %1387 = vdwg.mxu0
    %1388 = vmatpush.msra.mxu0 %v1323
    %1389 = vmatpush.msra.mxu0 %v1322
    %1390 = vmatpush.msra.mxu0 %v1321
    %1391 = vmatpush.msra.mxu0 %v1320
    %1392 = vmatpush.msra.mxu0 %v1319
    %1393 = vmatpush.msra.mxu0 %v1318
    %1394 = vmatpush.msra.mxu0 %v1317
    %1395 = vmatpush.msra.mxu0 %v1316
    %1396 = vmatpush.msra.mxu0 %v1315
    %1397 = vmatpush.msra.mxu0 %v1314
    %1398 = vmatpush.msra.mxu0 %v1313
    %1399 = vmatpush.msra.mxu0 %v1312
    %1400 = vmatpush.msra.mxu0 %v1311
    %1401 = vmatpush.msra.mxu0 %v1310
    %1402 = vmatpush.msra.mxu0 %v1309
    %1403 = vmatpush.msra.mxu0 %v1308
    %1404 = vmatmul.f32.gmra.mxu0 %v1386
    %v1405 = vpop.f32.mrf.mxu0
    %v1406 = vadd.f32 0.0, %v1405
    %1407 = vdwg.mxu0
    %v1408 = vmax.f32 %v1386, %v1406
    %1409 = vmatpush.msra.mxu0 %v1339
    %1410 = vmatpush.msra.mxu0 %v1338
    %1411 = vmatpush.msra.mxu0 %v1337
    %1412 = vmatpush.msra.mxu0 %v1336
    %1413 = vmatpush.msra.mxu0 %v1335
    %1414 = vmatpush.msra.mxu0 %v1334
    %1415 = vmatpush.msra.mxu0 %v1333
    %1416 = vmatpush.msra.mxu0 %v1332
    %1417 = vmatpush.msra.mxu0 %v1331
    %1418 = vmatpush.msra.mxu0 %v1330
    %1419 = vmatpush.msra.mxu0 %v1329
    %1420 = vmatpush.msra.mxu0 %v1328
    %1421 = vmatpush.msra.mxu0 %v1327
    %1422 = vmatpush.msra.mxu0 %v1326
    %1423 = vmatpush.msra.mxu0 %v1325
    %1424 = vmatpush.msra.mxu0 %v1324
    %1425 = vmatmul.f32.gmra.mxu0 %v1408
    %v1426 = vpop.f32.mrf.mxu0
    %v1427 = vadd.f32 0.0, %v1426
    %1428 = vdwg.mxu0
    %v1429 = vld [vmem:[#allocation26] sm:$0xff]
    %v1430 = vld [vmem:[#allocation26 + $0x8] sm:$0xff]
    %v1431 = vld [vmem:[#allocation26 + $0x10] sm:$0xff]
    %v1432 = vld [vmem:[#allocation26 + $0x18] sm:$0xff]
    %v1433 = vld [vmem:[#allocation26 + $0x20] sm:$0xff]
    %v1434 = vld [vmem:[#allocation26 + $0x28] sm:$0xff]
    %v1435 = vld [vmem:[#allocation26 + $0x30] sm:$0xff]
    %v1436 = vld [vmem:[#allocation26 + $0x38] sm:$0xff]
    %v1438 = vsel %vm443, %v1427, 0
    %1440 = vmatpush.msra.mxu0 0.0
    %1441 = vmatpush.msra.mxu0 0.0
    %1442 = vmatpush.msra.mxu0 0.0
    %1443 = vmatpush.msra.mxu0 0.0
    %1444 = vmatpush.msra.mxu0 0.0
    %1445 = vmatpush.msra.mxu0 0.0
    %1446 = vmatpush.msra.mxu0 0.0
    %1447 = vmatpush.msra.mxu0 0.0
    %1448 = vmatpush.msra.mxu0 %v1436
    %1449 = vmatpush.msra.mxu0 %v1435
    %1450 = vmatpush.msra.mxu0 %v1434
    %1451 = vmatpush.msra.mxu0 %v1433
    %1452 = vmatpush.msra.mxu0 %v1432
    %1453 = vmatpush.msra.mxu0 %v1431
    %1454 = vmatpush.msra.mxu0 %v1430
    %1455 = vmatpush.msra.mxu0 %v1429
    %1456 = vmatmul.f32.gmra.mxu0 %v1438
    %v1457 = vpop.f32.mrf.mxu0
    %v1458 = vadd.f32 0.0, %v1457
    %1459 = vdwg.mxu0
    %v1460 = vld [vmem:[%s20] sm:$0xff]
    %v1461 = vmul.f32 %v1458, %v1460
    %v1462 = vld [vmem:[#allocation28] sm:$0x3]
    %vm1463 = vcmask 64512
    %v1465 = vsel %vm1463, %v1462, 0
    %1467 = vmatpush.msra.mxu0 0.0
    %1468 = vmatpush.msra.mxu0 0.0
    %1469 = vmatpush.msra.mxu0 0.0
    %1470 = vmatpush.msra.mxu0 0.0
    %1471 = vmatpush.msra.mxu0 0.0
    %1472 = vmatpush.msra.mxu0 0.0
    %1473 = vmatpush.msra.mxu0 0.0
    %1474 = vmatpush.msra.mxu0 0.0
    %1475 = vmatpush.msra.mxu0 0.0
    %1476 = vmatpush.msra.mxu0 0.0
    %1477 = vmatpush.msra.mxu0 0.0
    %1478 = vmatpush.msra.mxu0 0.0
    %1479 = vmatpush.msra.mxu0 0.0
    %1480 = vmatpush.msra.mxu0 0.0
    %1481 = vmatpush.msra.mxu0 0.0
    %1482 = vmatpush.msra.mxu0 %v1461
    %1483 = vmatmul.f32.gmra.mxu0 %v1465
    %v1484 = vpop.f32.mrf.mxu0
    %v1485 = vadd.f32 0.0, %v1484
    %1486 = vdwg.mxu0
    %v1487 = vld [vmem:[%s22] sm:$0xff]
    %v1488 = vld [vmem:[%s23] sm:$0x1]
    %v1490 = vperm.slane %v1488, 0
    %v1493 = vsel %vm1463, %v1485, 0
    %1495 = vmatpush.msra.mxu0 0.0
    %1496 = vmatpush.msra.mxu0 0.0
    %1497 = vmatpush.msra.mxu0 0.0
    %1498 = vmatpush.msra.mxu0 0.0
    %1499 = vmatpush.msra.mxu0 0.0
    %1500 = vmatpush.msra.mxu0 0.0
    %1501 = vmatpush.msra.mxu0 0.0
    %1502 = vmatpush.msra.mxu0 0.0
    %1503 = vmatpush.msra.mxu0 0.0
    %1504 = vmatpush.msra.mxu0 0.0
    %1505 = vmatpush.msra.mxu0 0.0
    %1506 = vmatpush.msra.mxu0 0.0
    %1507 = vmatpush.msra.mxu0 0.0
    %1508 = vmatpush.msra.mxu0 0.0
    %1509 = vmatpush.msra.mxu0 0.0
    %1510 = vmatpush.msra.mxu0 %v1487
    %1511 = vmatmul.f32.gmra.mxu0 %v1493
    %v1512 = vpop.f32.mrf.mxu0
    %v1513 = vadd.f32 %v1490, %v1512
    %1514 = vdwg.mxu0
    %vm1515 = vcmask 9216
    %v1516 = vsel %vm1515, %v1513, -inf
    %1517 = vmax.xlane.f32.xlu0 %v1516
    %v1518 = vpop.xlane.xlu0 %1517
    %v1519 = vsub.f32 %v1513, %v1518
    %v1520 = vmul.f32 %v1519, 1.442695
    %v1521 = vpow.pop %v1520
    %v1522 = vsel %vm1515, %v1521, 0.0
    %1523 = vadd.xlane.f32.xlu0 %v1522
    %v1524 = vpop.xlane.xlu0 %1523
    %v1525 = vrcp.pop %v1524
    %v1526 = vmul.f32 %v1524, %v1525
    %v1527 = vsub.f32 1.0, %v1526
    %v1528 = vmul.f32 %v1525, %v1527
    %v1529 = vadd.f32 %v1525, %v1528
    %vm1530 = vweird.f32 %v1524
    %vm1531 = vweird.f32 %v1525
    %vm1532 = vmor %vm1530, %vm1531
    %v1533 = vsel %vm1532, %v1525, %v1529
    %v1534 = vand.u32 2147483647, %v1524
    %vm1535 = vcmp.eq.f32.partialorder %v1534, 8.507059e+37
    %v1536 = vand.u32 %v1524, 2147483648
    %v1537 = vor.u32 1.1754944e-38, %v1536
    %v1538 = vsel %vm1535, %v1537, %v1533
    %v1539 = vmul.f32 %v1521, %v1538
    %1540 = vst.msk [vmem:[#allocation29] sm:$0x3] %vm1515, %v1539
    // Predicated region
    $region166: #{_lambda_.1} parent=1 // pred_check
      _
    $region167: #{_lambda_.1} parent=1 // pred_check_branch
      %1542 = sbr.rel (0) target = $region169
    $region168: #{_lambda_.1} parent=1 // pred_region
      %1544 = vsyncadd [#allocation4], 0
      %s1546 = sshll.u32 [#allocation29], 4
      %s1547 = int_to_ptr.vmem [resolvable:$true] %s1546
      %s1548 = sshll.u32 %s24, 4
      %s1549 = int_to_ptr.hbm [resolvable:$true] %s1548
      %1551 = dma.vmem_to_hbm [thread:$0]  %s1547, 32, %s1549, [#allocation4]
    $region169: #{_lambda_.1} parent=1 // pred_fallthru
      _
    // Predicated region
    $region170: #{_lambda_.1} parent=1 // pred_check
      _
    $region171: #{_lambda_.1} parent=1 // pred_check_branch
      %1553 = sbr.rel (0) target = $region173
    $region172: #{_lambda_.1} parent=1 // pred_region
      %1555 = dma.done [#allocation4], 32
    $region173: #{_lambda_.1} parent=1 // pred_fallthru
      _
    %1556 = vsyncpa [#allocation3], 1
    %1557 = vsyncpa [#allocation6], 1
    %1558 = vsyncpa [#allocation9], 1
    %1559 = vsyncpa [#allocation12], 1
    %1560 = vsyncpa [#allocation15], 1
    %1561 = vsyncpa [#allocation18], 1
    %1562 = vsyncpa [#allocation21], 1
    %1563 = vsyncpa [#allocation24], 1
    %1564 = vsyncpa [#allocation27], 1
    %1565 = vsyncpa [#allocation4], 1

</llo_original>
